<compile_context>
chip_gen: v6e
topology: v6e:2x2x1
jax: 0.10.0
libtpu: 0.0.40
codegen_flags: <defaults>
</compile_context>

<pallas_src>
import math
import numpy as np
import jax
import jax.numpy as jnp
from jax.experimental import pallas as pl
from jax.experimental.pallas import tpu as pltpu


def _norm_cdf(v):
    return 0.5 * (1.0 + math.erf(v / math.sqrt(2.0)))


def _gen_kernel(kernel_size=5, sigma=3):
    # identical math to the torch module's _gen_kernel (scipy.stats.norm.cdf
    # replaced by the closed-form erf expression).
    interval = (2 * sigma + 1.0) / kernel_size
    x = np.linspace(-sigma - interval / 2.0, sigma + interval / 2.0, kernel_size + 1)
    cdf = np.array([_norm_cdf(float(v)) for v in x], dtype=np.float64)
    kern1d = np.diff(cdf)
    kernel_raw = np.sqrt(np.outer(kern1d, kern1d))
    kernel = kernel_raw / kernel_raw.sum()
    return kernel.astype(np.float32)


def _gen_kernel_1d(kernel_size=5, sigma=3):
    # kernel_raw = sqrt(outer(k,k)) = outer(sqrt(k), sqrt(k)), so the
    # normalized 2D kernel is exactly outer(k1, k1) with k1 = sqrt(k)/sum(sqrt(k)).
    interval = (2 * sigma + 1.0) / kernel_size
    x = np.linspace(-sigma - interval / 2.0, sigma + interval / 2.0, kernel_size + 1)
    cdf = np.array([_norm_cdf(float(v)) for v in x], dtype=np.float64)
    kern1d = np.diff(cdf)
    s = np.sqrt(kern1d)
    return s / s.sum()          # float64; baked into the kernel as python floats


def _cdiv(a, b):
    return -(-a // b)


def _round_up(a, m):
    return _cdiv(a, m) * m


def _tpu_budget():
    """(per-block VMEM budget bytes, vmem_limit_bytes, has 2 TensorCores)."""
    kind = ""
    try:
        kind = jax.devices()[0].device_kind.lower()
    except Exception:
        pass
    if "v7" in kind:
        # v7x: 64 MiB VMEM / TC, 2 TCs per chip -> small blocks, even grid split.
        return 12 << 20, 40 << 20, True
    if ("v6" in kind) or ("v5e" in kind) or ("v5 lite" in kind) or ("v5lite" in kind):
        # v5e / v6e: 128 MiB VMEM, single TC -> big blocks, no forced split.
        return 48 << 20, 96 << 20, False
    # unknown / older generation: conservative defaults, assume possible megacore.
    return 24 << 20, 64 << 20, True


def gaussian2d(x, kernel_size=5):
    """Equivalent of _Gaussian2d(in_dim=C, kernel_size).forward(x) for NCHW x."""
    assert kernel_size % 2 == 1, "only odd kernel sizes reproduce PyTorch same-size padding"
    N, C, H, W = x.shape
    K = kernel_size
    pad = (K - 1) // 2
    Hp, Wp = H + 2 * pad, W + 2 * pad
    wts = [float(v) for v in _gen_kernel_1d(K)]   # separable 1D taps (compile-time consts)

    # Fuse batch+channel (depthwise conv, one shared kernel) and go channels-last
    # so the per-channel-independent axis lands on the 128-lane dimension.
    B = N * C
    xt = jnp.transpose(x, (2, 3, 0, 1)).reshape(H, W, B)   # (H, W, B), lane-dense

    budget, vmem_limit, multicore = _tpu_budget()

    # --- per-channel (per-lane) VMEM accounting, sublane dims padded to 8 ---
    itemsize = x.dtype.itemsize
    per_ch = (
        2 * H * _round_up(W, 8) * itemsize      # input block, double-buffered
        + 2 * H * _round_up(W, 8) * itemsize    # output block, double-buffered
        + Hp * _round_up(Wp, 8) * 4             # padded f32 scratch
        + H * _round_up(Wp, 8) * 4              # vt f32 temporary
        + H * _round_up(W, 8) * 4               # acc f32 temporary
    )
    cap = max(1, budget // per_ch)              # channels fitting the budget

    # BT must be a multiple of 128 (lane tiling) unless it equals the full axis B.
    if B <= cap and not (multicore and B >= 256):
        BT = B
    else:
        bt_max = max(128, (cap // 128) * 128)
        n_steps = _cdiv(B, bt_max)
        if multicore:
            if n_steps < 2:
                n_steps = 2
            elif n_steps % 2:
                n_steps += 1                    # even step count -> balanced 2-TC split
            BT = _round_up(_cdiv(B, n_steps), 128)
        else:
            BT = bt_max
    grid = (_cdiv(B, BT),)

    def kern(x_ref, o_ref, pad_ref):
        # x_ref/o_ref: (H, W, BT)   pad_ref: (Hp, Wp, BT) f32 scratch
        @pl.when(pl.program_id(0) == 0)
        def _zero_halo_once():
            # Halo is never written and the interior is fully overwritten every
            # step, so zeroing once suffices (scratch persists across grid steps).
            pad_ref[...] = jnp.zeros_like(pad_ref)

        # Zero-pad in VMEM (no HBM padded copy); single tile-wide cast to f32.
        pad_ref[pad:pad + H, pad:pad + W, :] = x_ref[...].astype(jnp.float32)

        # Separable Gaussian.  Vertical pass: leading-dim offsets (pure addressing).
        vt = wts[0] * pad_ref[0:H, :, :]
        for dy in range(1, K):
            vt = vt + wts[dy] * pad_ref[dy:dy + H, :, :]

        # Horizontal pass: sublane offsets -- no lane shifts, dense-lane stores.
        acc = wts[0] * vt[:, 0:W, :]
        for dx in range(1, K):
            acc = acc + wts[dx] * vt[:, dx:dx + W, :]

        o_ref[...] = acc.astype(o_ref.dtype)

    out = pl.pallas_call(
        kern,
        out_shape=jax.ShapeDtypeStruct((H, W, B), x.dtype),
        grid_spec=pltpu.PrefetchScalarGridSpec(
            num_scalar_prefetch=0,
            grid=grid,
            in_specs=[pl.BlockSpec((H, W, BT), lambda i: (0, 0, i))],
            out_specs=pl.BlockSpec((H, W, BT), lambda i: (0, 0, i)),
            scratch_shapes=[pltpu.VMEM((Hp, Wp, BT), jnp.float32)],
        ),
        compiler_params=pltpu.CompilerParams(
            dimension_semantics=("parallel",),
            vmem_limit_bytes=vmem_limit,
        ),
    )(xt)

    # back to NCHW
    return jnp.transpose(out.reshape(H, W, N, C), (2, 3, 0, 1))


def _reference(x, kernel_size=5):
    # pure-JAX reference of F.conv2d(x, prior, padding=pad, groups=C)
    N, C, H, W = x.shape
    pad = (kernel_size - 1) // 2
    w = jnp.asarray(_gen_kernel(kernel_size), dtype=x.dtype)
    prior = jnp.broadcast_to(w[None, None], (C, 1, kernel_size, kernel_size))
    return jax.lax.conv_general_dilated(
        x, prior, window_strides=(1, 1),
        padding=[(pad, pad), (pad, pad)],
        feature_group_count=C,
        dimension_numbers=("NCHW", "OIHW", "NCHW"),
    )


if __name__ == "__main__":
    key = jax.random.PRNGKey(0)
    N, C, H, W = 2, 4, 16, 16
    x = jax.random.normal(key, (N, C, H, W), dtype=jnp.float32)

    y = gaussian2d(x, kernel_size=5)
    y = jax.block_until_ready(y)

    y_ref = jax.block_until_ready(_reference(x, kernel_size=5))
    assert y.shape == (N, C, H, W)
    assert np.allclose(np.asarray(y), np.asarray(y_ref), atol=1e-5, rtol=1e-5)

    print("KERNEL_OK")
</pallas_src>

<mosaic_0001>
module attributes {stable_mosaic.version = 11 : i64} {
  func.func @kern(%arg0: i32, %arg1: memref<16x16x8xf32, #tpu.memory_space<vmem>>, %arg2: memref<16x16x8xf32, #tpu.memory_space<vmem>>, %arg3: memref<20x20x8xf32, #tpu.memory_space<vmem>>) attributes {dimension_semantics = [#tpu.dimension_semantics<parallel>], iteration_bounds = array<i64: 1>, scalar_prefetch = 0 : i64, scratch_operands = 1 : i64, tpu.core_type = #tpu.core_type<tc>, window_params = [{transform_indices = @transform_0, window_bounds = array<i64: 16, 16, 8>}, {transform_indices = @transform_1, window_bounds = array<i64: 16, 16, 8>}]} {
    %c0_i32 = arith.constant 0 : i32
    %0 = arith.cmpi eq, %arg0, %c0_i32 : i32
    %1 = arith.extui %0 : i1 to i32
    %c0_i32_0 = arith.constant 0 : i32
    %2 = arith.cmpi ne, %1, %c0_i32_0 : i32
    scf.if %2 {
      %cst_29 = arith.constant 0.000000e+00 : f32
      %44 = vector.broadcast %cst_29 : f32 to vector<20x20x8xf32>
      %c0_30 = arith.constant 0 : index
      %c0_31 = arith.constant 0 : index
      %c0_32 = arith.constant 0 : index
      %45 = vector.load %arg3[%c0_30, %c0_31, %c0_32] : memref<20x20x8xf32, #tpu.memory_space<vmem>>, vector<20x20x8xf32>
      tpu.vector_store %arg3[%c0_30, %c0_31, %c0_32], %44 {strides = array<i32>} : memref<20x20x8xf32, #tpu.memory_space<vmem>>, vector<20x20x8xf32>,
    } else {
    }
    %c0 = arith.constant 0 : index
    %c0_1 = arith.constant 0 : index
    %c0_2 = arith.constant 0 : index
    %3 = vector.load %arg1[%c0, %c0_1, %c0_2] : memref<16x16x8xf32, #tpu.memory_space<vmem>>, vector<16x16x8xf32>
    %c2 = arith.constant 2 : index
    %c2_3 = arith.constant 2 : index
    %c0_4 = arith.constant 0 : index
    %4 = vector.load %arg3[%c2, %c2_3, %c0_4] : memref<20x20x8xf32, #tpu.memory_space<vmem>>, vector<16x16x8xf32>
    tpu.vector_store %arg3[%c2, %c2_3, %c0_4], %3 {strides = array<i32>} : memref<20x20x8xf32, #tpu.memory_space<vmem>>, vector<16x16x8xf32>,
    %c0_5 = arith.constant 0 : index
    %c0_6 = arith.constant 0 : index
    %c0_7 = arith.constant 0 : index
    %5 = vector.load %arg3[%c0_5, %c0_6, %c0_7] : memref<20x20x8xf32, #tpu.memory_space<vmem>>, vector<16x20x8xf32>
    %cst = arith.constant 0.0604114048 : f32
    %6 = vector.broadcast %cst : f32 to vector<16x20x8xf32>
    %7 = arith.mulf %6, %5 : vector<16x20x8xf32>
    %c1 = arith.constant 1 : index
    %c0_8 = arith.constant 0 : index
    %c0_9 = arith.constant 0 : index
    %8 = vector.load %arg3[%c1, %c0_8, %c0_9] : memref<20x20x8xf32, #tpu.memory_space<vmem>>, vector<16x20x8xf32>
    %cst_10 = arith.constant 0.245542362 : f32
    %9 = vector.broadcast %cst_10 : f32 to vector<16x20x8xf32>
    %10 = arith.mulf %9, %8 : vector<16x20x8xf32>
    %11 = arith.addf %7, %10 : vector<16x20x8xf32>
    %c2_11 = arith.constant 2 : index
    %c0_12 = arith.constant 0 : index
    %c0_13 = arith.constant 0 : index
    %12 = vector.load %arg3[%c2_11, %c0_12, %c0_13] : memref<20x20x8xf32, #tpu.memory_space<vmem>>, vector<16x20x8xf32>
    %cst_14 = arith.constant 0.388092488 : f32
    %13 = vector.broadcast %cst_14 : f32 to vector<16x20x8xf32>
    %14 = arith.mulf %13, %12 : vector<16x20x8xf32>
    %15 = arith.addf %11, %14 : vector<16x20x8xf32>
    %c3 = arith.constant 3 : index
    %c0_15 = arith.constant 0 : index
    %c0_16 = arith.constant 0 : index
    %16 = vector.load %arg3[%c3, %c0_15, %c0_16] : memref<20x20x8xf32, #tpu.memory_space<vmem>>, vector<16x20x8xf32>
    %cst_17 = arith.constant 0.245542362 : f32
    %17 = vector.broadcast %cst_17 : f32 to vector<16x20x8xf32>
    %18 = arith.mulf %17, %16 : vector<16x20x8xf32>
    %19 = arith.addf %15, %18 : vector<16x20x8xf32>
    %c4 = arith.constant 4 : index
    %c0_18 = arith.constant 0 : index
    %c0_19 = arith.constant 0 : index
    %20 = vector.load %arg3[%c4, %c0_18, %c0_19] : memref<20x20x8xf32, #tpu.memory_space<vmem>>, vector<16x20x8xf32>
    %cst_20 = arith.constant 0.0604114048 : f32
    %21 = vector.broadcast %cst_20 : f32 to vector<16x20x8xf32>
    %22 = arith.mulf %21, %20 : vector<16x20x8xf32>
    %23 = arith.addf %19, %22 : vector<16x20x8xf32>
    %24 = vector.extract_strided_slice %23 {offsets = [0, 0, 0], sizes = [16, 16, 8], strides = [1, 1, 1]} : vector<16x20x8xf32> to vector<16x16x8xf32>
    %cst_21 = arith.constant 0.0604114048 : f32
    %25 = vector.broadcast %cst_21 : f32 to vector<16x16x8xf32>
    %26 = arith.mulf %25, %24 : vector<16x16x8xf32>
    %27 = vector.extract_strided_slice %23 {offsets = [0, 1, 0], sizes = [16, 16, 8], strides = [1, 1, 1]} : vector<16x20x8xf32> to vector<16x16x8xf32>
    %cst_22 = arith.constant 0.245542362 : f32
    %28 = vector.broadcast %cst_22 : f32 to vector<16x16x8xf32>
    %29 = arith.mulf %28, %27 : vector<16x16x8xf32>
    %30 = arith.addf %26, %29 : vector<16x16x8xf32>
    %31 = vector.extract_strided_slice %23 {offsets = [0, 2, 0], sizes = [16, 16, 8], strides = [1, 1, 1]} : vector<16x20x8xf32> to vector<16x16x8xf32>
    %cst_23 = arith.constant 0.388092488 : f32
    %32 = vector.broadcast %cst_23 : f32 to vector<16x16x8xf32>
    %33 = arith.mulf %32, %31 : vector<16x16x8xf32>
    %34 = arith.addf %30, %33 : vector<16x16x8xf32>
    %35 = vector.extract_strided_slice %23 {offsets = [0, 3, 0], sizes = [16, 16, 8], strides = [1, 1, 1]} : vector<16x20x8xf32> to vector<16x16x8xf32>
    %cst_24 = arith.constant 0.245542362 : f32
    %36 = vector.broadcast %cst_24 : f32 to vector<16x16x8xf32>
    %37 = arith.mulf %36, %35 : vector<16x16x8xf32>
    %38 = arith.addf %34, %37 : vector<16x16x8xf32>
    %39 = vector.extract_strided_slice %23 {offsets = [0, 4, 0], sizes = [16, 16, 8], strides = [1, 1, 1]} : vector<16x20x8xf32> to vector<16x16x8xf32>
    %cst_25 = arith.constant 0.0604114048 : f32
    %40 = vector.broadcast %cst_25 : f32 to vector<16x16x8xf32>
    %41 = arith.mulf %40, %39 : vector<16x16x8xf32>
    %42 = arith.addf %38, %41 : vector<16x16x8xf32>
    %c0_26 = arith.constant 0 : index
    %c0_27 = arith.constant 0 : index
    %c0_28 = arith.constant 0 : index
    %43 = vector.load %arg2[%c0_26, %c0_27, %c0_28] : memref<16x16x8xf32, #tpu.memory_space<vmem>>, vector<16x16x8xf32>
    tpu.vector_store %arg2[%c0_26, %c0_27, %c0_28], %42 {strides = array<i32>} : memref<16x16x8xf32, #tpu.memory_space<vmem>>, vector<16x16x8xf32>,
    return
  }
  func.func @transform_0(%arg0: i32) -> (i32, i32, i32) {
    %c0_i32 = arith.constant 0 : i32
    %c0_i32_0 = arith.constant 0 : i32
    %c0_i32_1 = arith.constant 0 : i32
    return %c0_i32, %c0_i32_0, %arg0 : i32, i32, i32
  }
  func.func @transform_1(%arg0: i32) -> (i32, i32, i32) {
    %c0_i32 = arith.constant 0 : i32
    %c0_i32_0 = arith.constant 0 : i32
    %c0_i32_1 = arith.constant 0 : i32
    return %c0_i32, %c0_i32_0, %arg0 : i32, i32, i32
  }
}

</mosaic_0001>

<llo_original>
// kernel: tpu_custom_call.1
$region0: #{tpu_custom_call.1}
  #allocation0 [shape = 'u32[]', space=smem, size = 0x4, offset = 0x4, fixed_abs, tag = 'smem constant byte address 0x4 - core index']
  #allocation1 [shape = 'u32[144,128]{1,0:T(1,128)}', space=vmem, size = 0x12000, scoped, tag = 'internal scratch']
  #allocation2 [shape = 'f32[20,20,8]{2,1,0:T(8,128)}', space=vmem, size = 0x3c000, scoped, tag = 'scratch operand']
  %s0 = inlined_call_operand.vmem [shape: f32[16,16,8], index: 0, kind: input, shape index: {}]
  %s1 = inlined_call_operand.vmem [shape: f32[16,16,8], index: 1, kind: output, shape index: {}]
  %s2 = sld [smem:[#allocation0]]
  $region18: #{tpu_custom_call.1} parent=0
    _
  %s4 = ssub.s32 1, %s2
  %s5 = scalar_select 0, %s4, %s2
  // Predicated region
  $region2: #{tpu_custom_call.1} parent=0 // pred_check
    _
  $region3: #{tpu_custom_call.1} parent=0 // pred_check_branch
    %7 = sbr.rel (0) target = $region5
  $region4: #{tpu_custom_call.1} parent=0 // pred_region
    _
  $region5: #{tpu_custom_call.1} parent=0 // pred_fallthru
    _
  %p8 = scmp.eq.s32.totalorder 0, 0
  // Predicated region
  $region6: #{tpu_custom_call.1} parent=0 // pred_check
    %p9 = pneg %p8
  $region7: #{tpu_custom_call.1} parent=0 // pred_check_branch
    %11 = sbr.rel (%p9) target = $region9
  $region8: #{tpu_custom_call.1} parent=0 // pred_region
    %vm12 = vcmask 64512
    %13 = vst.msk [vmem:[#allocation2] sm:$0xff] %vm12, 0.0
    %14 = vst.msk [vmem:[#allocation2 + $0x8] sm:$0xff] %vm12, 0.0
    %vm15 = vcmask 60416
    %16 = vst.msk [vmem:[#allocation2 + $0x10] sm:$0xf] %vm15, 0.0
    %17 = vst.msk [vmem:[#allocation2 + $0x18] sm:$0xff] %vm12, 0.0
    %18 = vst.msk [vmem:[#allocation2 + $0x20] sm:$0xff] %vm12, 0.0
    %19 = vst.msk [vmem:[#allocation2 + $0x28] sm:$0xf] %vm15, 0.0
    %20 = vst.msk [vmem:[#allocation2 + $0x30] sm:$0xff] %vm12, 0.0
    %21 = vst.msk [vmem:[#allocation2 + $0x38] sm:$0xff] %vm12, 0.0
    %22 = vst.msk [vmem:[#allocation2 + $0x40] sm:$0xf] %vm15, 0.0
    %23 = vst.msk [vmem:[#allocation2 + $0x48] sm:$0xff] %vm12, 0.0
    %24 = vst.msk [vmem:[#allocation2 + $0x50] sm:$0xff] %vm12, 0.0
    %25 = vst.msk [vmem:[#allocation2 + $0x58] sm:$0xf] %vm15, 0.0
    %26 = vst.msk [vmem:[#allocation2 + $0x60] sm:$0xff] %vm12, 0.0
    %27 = vst.msk [vmem:[#allocation2 + $0x68] sm:$0xff] %vm12, 0.0
    %28 = vst.msk [vmem:[#allocation2 + $0x70] sm:$0xf] %vm15, 0.0
    %29 = vst.msk [vmem:[#allocation2 + $0x78] sm:$0xff] %vm12, 0.0
    %30 = vst.msk [vmem:[#allocation2 + $0x80] sm:$0xff] %vm12, 0.0
    %31 = vst.msk [vmem:[#allocation2 + $0x88] sm:$0xf] %vm15, 0.0
    %32 = vst.msk [vmem:[#allocation2 + $0x90] sm:$0xff] %vm12, 0.0
    %33 = vst.msk [vmem:[#allocation2 + $0x98] sm:$0xff] %vm12, 0.0
    %34 = vst.msk [vmem:[#allocation2 + $0xa0] sm:$0xf] %vm15, 0.0
    %35 = vst.msk [vmem:[#allocation2 + $0xa8] sm:$0xff] %vm12, 0.0
    %36 = vst.msk [vmem:[#allocation2 + $0xb0] sm:$0xff] %vm12, 0.0
    %37 = vst.msk [vmem:[#allocation2 + $0xb8] sm:$0xf] %vm15, 0.0
    %38 = vst.msk [vmem:[#allocation2 + $0xc0] sm:$0xff] %vm12, 0.0
    %39 = vst.msk [vmem:[#allocation2 + $0xc8] sm:$0xff] %vm12, 0.0
    %40 = vst.msk [vmem:[#allocation2 + $0xd0] sm:$0xf] %vm15, 0.0
    %41 = vst.msk [vmem:[#allocation2 + $0xd8] sm:$0xff] %vm12, 0.0
    %42 = vst.msk [vmem:[#allocation2 + $0xe0] sm:$0xff] %vm12, 0.0
    %43 = vst.msk [vmem:[#allocation2 + $0xe8] sm:$0xf] %vm15, 0.0
    %44 = vst.msk [vmem:[#allocation2 + $0xf0] sm:$0xff] %vm12, 0.0
    %45 = vst.msk [vmem:[#allocation2 + $0xf8] sm:$0xff] %vm12, 0.0
    %46 = vst.msk [vmem:[#allocation2 + $0x100] sm:$0xf] %vm15, 0.0
    %47 = vst.msk [vmem:[#allocation2 + $0x108] sm:$0xff] %vm12, 0.0
    %48 = vst.msk [vmem:[#allocation2 + $0x110] sm:$0xff] %vm12, 0.0
    %49 = vst.msk [vmem:[#allocation2 + $0x118] sm:$0xf] %vm15, 0.0
    %50 = vst.msk [vmem:[#allocation2 + $0x120] sm:$0xff] %vm12, 0.0
    %51 = vst.msk [vmem:[#allocation2 + $0x128] sm:$0xff] %vm12, 0.0
    %52 = vst.msk [vmem:[#allocation2 + $0x130] sm:$0xf] %vm15, 0.0
    %53 = vst.msk [vmem:[#allocation2 + $0x138] sm:$0xff] %vm12, 0.0
    %54 = vst.msk [vmem:[#allocation2 + $0x140] sm:$0xff] %vm12, 0.0
    %55 = vst.msk [vmem:[#allocation2 + $0x148] sm:$0xf] %vm15, 0.0
    %56 = vst.msk [vmem:[#allocation2 + $0x150] sm:$0xff] %vm12, 0.0
    %57 = vst.msk [vmem:[#allocation2 + $0x158] sm:$0xff] %vm12, 0.0
    %58 = vst.msk [vmem:[#allocation2 + $0x160] sm:$0xf] %vm15, 0.0
    %59 = vst.msk [vmem:[#allocation2 + $0x168] sm:$0xff] %vm12, 0.0
    %60 = vst.msk [vmem:[#allocation2 + $0x170] sm:$0xff] %vm12, 0.0
    %61 = vst.msk [vmem:[#allocation2 + $0x178] sm:$0xf] %vm15, 0.0
    %62 = vst.msk [vmem:[#allocation2 + $0x180] sm:$0xff] %vm12, 0.0
    %63 = vst.msk [vmem:[#allocation2 + $0x188] sm:$0xff] %vm12, 0.0
    %64 = vst.msk [vmem:[#allocation2 + $0x190] sm:$0xf] %vm15, 0.0
    %65 = vst.msk [vmem:[#allocation2 + $0x198] sm:$0xff] %vm12, 0.0
    %66 = vst.msk [vmem:[#allocation2 + $0x1a0] sm:$0xff] %vm12, 0.0
    %67 = vst.msk [vmem:[#allocation2 + $0x1a8] sm:$0xf] %vm15, 0.0
    %68 = vst.msk [vmem:[#allocation2 + $0x1b0] sm:$0xff] %vm12, 0.0
    %69 = vst.msk [vmem:[#allocation2 + $0x1b8] sm:$0xff] %vm12, 0.0
    %70 = vst.msk [vmem:[#allocation2 + $0x1c0] sm:$0xf] %vm15, 0.0
    %71 = vst.msk [vmem:[#allocation2 + $0x1c8] sm:$0xff] %vm12, 0.0
    %72 = vst.msk [vmem:[#allocation2 + $0x1d0] sm:$0xff] %vm12, 0.0
    %73 = vst.msk [vmem:[#allocation2 + $0x1d8] sm:$0xf] %vm15, 0.0
  $region9: #{tpu_custom_call.1} parent=0 // pred_fallthru
    _
  %v74 = vld [vmem:[%s0] sm:$0xff]
  %v75 = vld [vmem:[%s0 + $0x8] sm:$0xff]
  %v76 = vld [vmem:[%s0 + $0x10] sm:$0xff]
  %v77 = vld [vmem:[%s0 + $0x18] sm:$0xff]
  %v78 = vld [vmem:[%s0 + $0x20] sm:$0xff]
  %v79 = vld [vmem:[%s0 + $0x28] sm:$0xff]
  %v80 = vld [vmem:[%s0 + $0x30] sm:$0xff]
  %v81 = vld [vmem:[%s0 + $0x38] sm:$0xff]
  %v82 = vld [vmem:[%s0 + $0x40] sm:$0xff]
  %v83 = vld [vmem:[%s0 + $0x48] sm:$0xff]
  %v84 = vld [vmem:[%s0 + $0x50] sm:$0xff]
  %v85 = vld [vmem:[%s0 + $0x58] sm:$0xff]
  %v86 = vld [vmem:[%s0 + $0x60] sm:$0xff]
  %v87 = vld [vmem:[%s0 + $0x68] sm:$0xff]
  %v88 = vld [vmem:[%s0 + $0x70] sm:$0xff]
  %v89 = vld [vmem:[%s0 + $0x78] sm:$0xff]
  %v90 = vld [vmem:[%s0 + $0x80] sm:$0xff]
  %v91 = vld [vmem:[%s0 + $0x88] sm:$0xff]
  %v92 = vld [vmem:[%s0 + $0x90] sm:$0xff]
  %v93 = vld [vmem:[%s0 + $0x98] sm:$0xff]
  %v94 = vld [vmem:[%s0 + $0xa0] sm:$0xff]
  %v95 = vld [vmem:[%s0 + $0xa8] sm:$0xff]
  %v96 = vld [vmem:[%s0 + $0xb0] sm:$0xff]
  %v97 = vld [vmem:[%s0 + $0xb8] sm:$0xff]
  %v98 = vld [vmem:[%s0 + $0xc0] sm:$0xff]
  %v99 = vld [vmem:[%s0 + $0xc8] sm:$0xff]
  %v100 = vld [vmem:[%s0 + $0xd0] sm:$0xff]
  %v101 = vld [vmem:[%s0 + $0xd8] sm:$0xff]
  %v102 = vld [vmem:[%s0 + $0xe0] sm:$0xff]
  %v103 = vld [vmem:[%s0 + $0xe8] sm:$0xff]
  %v104 = vld [vmem:[%s0 + $0xf0] sm:$0xff]
  %v105 = vld [vmem:[%s0 + $0xf8] sm:$0xff]
  %s106 = scalar_lea.vmem [#allocation2], 48
  %vm107 = vcmask 64512
  %108 = vst.msk [vmem:[%s106 + $0x2] sm:$0xff] %vm107, %v74
  %109 = vst.msk [vmem:[%s106 + $0xa] sm:$0xff] %vm107, %v75
  %110 = vst.msk [vmem:[%s106 + $0x1a] sm:$0xff] %vm107, %v76
  %111 = vst.msk [vmem:[%s106 + $0x22] sm:$0xff] %vm107, %v77
  %112 = vst.msk [vmem:[%s106 + $0x32] sm:$0xff] %vm107, %v78
  %113 = vst.msk [vmem:[%s106 + $0x3a] sm:$0xff] %vm107, %v79
  %114 = vst.msk [vmem:[%s106 + $0x4a] sm:$0xff] %vm107, %v80
  %115 = vst.msk [vmem:[%s106 + $0x52] sm:$0xff] %vm107, %v81
  %116 = vst.msk [vmem:[%s106 + $0x62] sm:$0xff] %vm107, %v82
  %117 = vst.msk [vmem:[%s106 + $0x6a] sm:$0xff] %vm107, %v83
  %118 = vst.msk [vmem:[%s106 + $0x7a] sm:$0xff] %vm107, %v84
  %119 = vst.msk [vmem:[%s106 + $0x82] sm:$0xff] %vm107, %v85
  %120 = vst.msk [vmem:[%s106 + $0x92] sm:$0xff] %vm107, %v86
  %121 = vst.msk [vmem:[%s106 + $0x9a] sm:$0xff] %vm107, %v87
  %122 = vst.msk [vmem:[%s106 + $0xaa] sm:$0xff] %vm107, %v88
  %123 = vst.msk [vmem:[%s106 + $0xb2] sm:$0xff] %vm107, %v89
  %124 = vst.msk [vmem:[%s106 + $0xc2] sm:$0xff] %vm107, %v90
  %125 = vst.msk [vmem:[%s106 + $0xca] sm:$0xff] %vm107, %v91
  %126 = vst.msk [vmem:[%s106 + $0xda] sm:$0xff] %vm107, %v92
  %127 = vst.msk [vmem:[%s106 + $0xe2] sm:$0xff] %vm107, %v93
  %128 = vst.msk [vmem:[%s106 + $0xf2] sm:$0xff] %vm107, %v94
  %129 = vst.msk [vmem:[%s106 + $0xfa] sm:$0xff] %vm107, %v95
  %130 = vst.msk [vmem:[%s106 + $0x10a] sm:$0xff] %vm107, %v96
  %131 = vst.msk [vmem:[%s106 + $0x112] sm:$0xff] %vm107, %v97
  %132 = vst.msk [vmem:[%s106 + $0x122] sm:$0xff] %vm107, %v98
  %133 = vst.msk [vmem:[%s106 + $0x12a] sm:$0xff] %vm107, %v99
  %134 = vst.msk [vmem:[%s106 + $0x13a] sm:$0xff] %vm107, %v100
  %135 = vst.msk [vmem:[%s106 + $0x142] sm:$0xff] %vm107, %v101
  %136 = vst.msk [vmem:[%s106 + $0x152] sm:$0xff] %vm107, %v102
  %137 = vst.msk [vmem:[%s106 + $0x15a] sm:$0xff] %vm107, %v103
  %138 = vst.msk [vmem:[%s106 + $0x16a] sm:$0xff] %vm107, %v104
  %139 = vst.msk [vmem:[%s106 + $0x172] sm:$0xff] %vm107, %v105
  %v140 = vld [vmem:[#allocation2] sm:$0xff]
  %v141 = vld [vmem:[#allocation2 + $0x8] sm:$0xff]
  %v142 = vld [vmem:[#allocation2 + $0x10] sm:$0xf]
  %v143 = vld [vmem:[#allocation2 + $0x18] sm:$0xff]
  %v144 = vld [vmem:[#allocation2 + $0x20] sm:$0xff]
  %v145 = vld [vmem:[#allocation2 + $0x28] sm:$0xf]
  %v146 = vld [vmem:[#allocation2 + $0x30] sm:$0xff]
  %v147 = vld [vmem:[#allocation2 + $0x38] sm:$0xff]
  %v148 = vld [vmem:[#allocation2 + $0x40] sm:$0xf]
  %v149 = vld [vmem:[#allocation2 + $0x48] sm:$0xff]
  %v150 = vld [vmem:[#allocation2 + $0x50] sm:$0xff]
  %v151 = vld [vmem:[#allocation2 + $0x58] sm:$0xf]
  %v152 = vld [vmem:[#allocation2 + $0x60] sm:$0xff]
  %v153 = vld [vmem:[#allocation2 + $0x68] sm:$0xff]
  %v154 = vld [vmem:[#allocation2 + $0x70] sm:$0xf]
  %v155 = vld [vmem:[#allocation2 + $0x78] sm:$0xff]
  %v156 = vld [vmem:[#allocation2 + $0x80] sm:$0xff]
  %v157 = vld [vmem:[#allocation2 + $0x88] sm:$0xf]
  %v158 = vld [vmem:[#allocation2 + $0x90] sm:$0xff]
  %v159 = vld [vmem:[#allocation2 + $0x98] sm:$0xff]
  %v160 = vld [vmem:[#allocation2 + $0xa0] sm:$0xf]
  %v161 = vld [vmem:[#allocation2 + $0xa8] sm:$0xff]
  %v162 = vld [vmem:[#allocation2 + $0xb0] sm:$0xff]
  %v163 = vld [vmem:[#allocation2 + $0xb8] sm:$0xf]
  %v164 = vld [vmem:[#allocation2 + $0xc0] sm:$0xff]
  %v165 = vld [vmem:[#allocation2 + $0xc8] sm:$0xff]
  %v166 = vld [vmem:[#allocation2 + $0xd0] sm:$0xf]
  %v167 = vld [vmem:[#allocation2 + $0xd8] sm:$0xff]
  %v168 = vld [vmem:[#allocation2 + $0xe0] sm:$0xff]
  %v169 = vld [vmem:[#allocation2 + $0xe8] sm:$0xf]
  %v170 = vld [vmem:[#allocation2 + $0xf0] sm:$0xff]
  %v171 = vld [vmem:[#allocation2 + $0xf8] sm:$0xff]
  %v172 = vld [vmem:[#allocation2 + $0x100] sm:$0xf]
  %v173 = vld [vmem:[#allocation2 + $0x108] sm:$0xff]
  %v174 = vld [vmem:[#allocation2 + $0x110] sm:$0xff]
  %v175 = vld [vmem:[#allocation2 + $0x118] sm:$0xf]
  %v176 = vld [vmem:[#allocation2 + $0x120] sm:$0xff]
  %v177 = vld [vmem:[#allocation2 + $0x128] sm:$0xff]
  %v178 = vld [vmem:[#allocation2 + $0x130] sm:$0xf]
  %v179 = vld [vmem:[#allocation2 + $0x138] sm:$0xff]
  %v180 = vld [vmem:[#allocation2 + $0x140] sm:$0xff]
  %v181 = vld [vmem:[#allocation2 + $0x148] sm:$0xf]
  %v182 = vld [vmem:[#allocation2 + $0x150] sm:$0xff]
  %v183 = vld [vmem:[#allocation2 + $0x158] sm:$0xff]
  %v184 = vld [vmem:[#allocation2 + $0x160] sm:$0xf]
  %v185 = vld [vmem:[#allocation2 + $0x168] sm:$0xff]
  %v186 = vld [vmem:[#allocation2 + $0x170] sm:$0xff]
  %v187 = vld [vmem:[#allocation2 + $0x178] sm:$0xf]
  %v188 = vmul.f32 %v140, 0.060411405
  %v189 = vmul.f32 %v141, 0.060411405
  %v190 = vmul.f32 %v142, 0.060411405
  %v191 = vmul.f32 %v143, 0.060411405
  %v192 = vmul.f32 %v144, 0.060411405
  %v193 = vmul.f32 %v145, 0.060411405
  %v194 = vmul.f32 %v146, 0.060411405
  %v195 = vmul.f32 %v147, 0.060411405
  %v196 = vmul.f32 %v148, 0.060411405
  %v197 = vmul.f32 %v149, 0.060411405
  %v198 = vmul.f32 %v150, 0.060411405
  %v199 = vmul.f32 %v151, 0.060411405
  %v200 = vmul.f32 %v152, 0.060411405
  %v201 = vmul.f32 %v153, 0.060411405
  %v202 = vmul.f32 %v154, 0.060411405
  %v203 = vmul.f32 %v155, 0.060411405
  %v204 = vmul.f32 %v156, 0.060411405
  %v205 = vmul.f32 %v157, 0.060411405
  %v206 = vmul.f32 %v158, 0.060411405
  %v207 = vmul.f32 %v159, 0.060411405
  %v208 = vmul.f32 %v160, 0.060411405
  %v209 = vmul.f32 %v161, 0.060411405
  %v210 = vmul.f32 %v162, 0.060411405
  %v211 = vmul.f32 %v163, 0.060411405
  %v212 = vmul.f32 %v164, 0.060411405
  %v213 = vmul.f32 %v165, 0.060411405
  %v214 = vmul.f32 %v166, 0.060411405
  %v215 = vmul.f32 %v167, 0.060411405
  %v216 = vmul.f32 %v168, 0.060411405
  %v217 = vmul.f32 %v169, 0.060411405
  %v218 = vmul.f32 %v170, 0.060411405
  %v219 = vmul.f32 %v171, 0.060411405
  %v220 = vmul.f32 %v172, 0.060411405
  %v221 = vmul.f32 %v173, 0.060411405
  %v222 = vmul.f32 %v174, 0.060411405
  %v223 = vmul.f32 %v175, 0.060411405
  %v224 = vmul.f32 %v176, 0.060411405
  %v225 = vmul.f32 %v177, 0.060411405
  %v226 = vmul.f32 %v178, 0.060411405
  %v227 = vmul.f32 %v179, 0.060411405
  %v228 = vmul.f32 %v180, 0.060411405
  %v229 = vmul.f32 %v181, 0.060411405
  %v230 = vmul.f32 %v182, 0.060411405
  %v231 = vmul.f32 %v183, 0.060411405
  %v232 = vmul.f32 %v184, 0.060411405
  %v233 = vmul.f32 %v185, 0.060411405
  %v234 = vmul.f32 %v186, 0.060411405
  %v235 = vmul.f32 %v187, 0.060411405
  %s236 = scalar_lea.vmem [#allocation2], 24
  %v237 = vld [vmem:[%s236] sm:$0xff]
  %v238 = vld [vmem:[%s236 + $0x8] sm:$0xff]
  %v239 = vld [vmem:[%s236 + $0x10] sm:$0xf]
  %v240 = vld [vmem:[%s236 + $0x18] sm:$0xff]
  %v241 = vld [vmem:[%s236 + $0x20] sm:$0xff]
  %v242 = vld [vmem:[%s236 + $0x28] sm:$0xf]
  %v243 = vld [vmem:[%s236 + $0x30] sm:$0xff]
  %v244 = vld [vmem:[%s236 + $0x38] sm:$0xff]
  %v245 = vld [vmem:[%s236 + $0x40] sm:$0xf]
  %v246 = vld [vmem:[%s236 + $0x48] sm:$0xff]
  %v247 = vld [vmem:[%s236 + $0x50] sm:$0xff]
  %v248 = vld [vmem:[%s236 + $0x58] sm:$0xf]
  %v249 = vld [vmem:[%s236 + $0x60] sm:$0xff]
  %v250 = vld [vmem:[%s236 + $0x68] sm:$0xff]
  %v251 = vld [vmem:[%s236 + $0x70] sm:$0xf]
  %v252 = vld [vmem:[%s236 + $0x78] sm:$0xff]
  %v253 = vld [vmem:[%s236 + $0x80] sm:$0xff]
  %v254 = vld [vmem:[%s236 + $0x88] sm:$0xf]
  %v255 = vld [vmem:[%s236 + $0x90] sm:$0xff]
  %v256 = vld [vmem:[%s236 + $0x98] sm:$0xff]
  %v257 = vld [vmem:[%s236 + $0xa0] sm:$0xf]
  %v258 = vld [vmem:[%s236 + $0xa8] sm:$0xff]
  %v259 = vld [vmem:[%s236 + $0xb0] sm:$0xff]
  %v260 = vld [vmem:[%s236 + $0xb8] sm:$0xf]
  %v261 = vld [vmem:[%s236 + $0xc0] sm:$0xff]
  %v262 = vld [vmem:[%s236 + $0xc8] sm:$0xff]
  %v263 = vld [vmem:[%s236 + $0xd0] sm:$0xf]
  %v264 = vld [vmem:[%s236 + $0xd8] sm:$0xff]
  %v265 = vld [vmem:[%s236 + $0xe0] sm:$0xff]
  %v266 = vld [vmem:[%s236 + $0xe8] sm:$0xf]
  %v267 = vld [vmem:[%s236 + $0xf0] sm:$0xff]
  %v268 = vld [vmem:[%s236 + $0xf8] sm:$0xff]
  %v269 = vld [vmem:[%s236 + $0x100] sm:$0xf]
  %v270 = vld [vmem:[%s236 + $0x108] sm:$0xff]
  %v271 = vld [vmem:[%s236 + $0x110] sm:$0xff]
  %v272 = vld [vmem:[%s236 + $0x118] sm:$0xf]
  %v273 = vld [vmem:[%s236 + $0x120] sm:$0xff]
  %v274 = vld [vmem:[%s236 + $0x128] sm:$0xff]
  %v275 = vld [vmem:[%s236 + $0x130] sm:$0xf]
  %v276 = vld [vmem:[%s236 + $0x138] sm:$0xff]
  %v277 = vld [vmem:[%s236 + $0x140] sm:$0xff]
  %v278 = vld [vmem:[%s236 + $0x148] sm:$0xf]
  %v279 = vld [vmem:[%s236 + $0x150] sm:$0xff]
  %v280 = vld [vmem:[%s236 + $0x158] sm:$0xff]
  %v281 = vld [vmem:[%s236 + $0x160] sm:$0xf]
  %v282 = vld [vmem:[%s236 + $0x168] sm:$0xff]
  %v283 = vld [vmem:[%s236 + $0x170] sm:$0xff]
  %v284 = vld [vmem:[%s236 + $0x178] sm:$0xf]
  %v285 = vmul.f32 %v237, 0.24554236
  %v286 = vmul.f32 %v238, 0.24554236
  %v287 = vmul.f32 %v239, 0.24554236
  %v288 = vmul.f32 %v240, 0.24554236
  %v289 = vmul.f32 %v241, 0.24554236
  %v290 = vmul.f32 %v242, 0.24554236
  %v291 = vmul.f32 %v243, 0.24554236
  %v292 = vmul.f32 %v244, 0.24554236
  %v293 = vmul.f32 %v245, 0.24554236
  %v294 = vmul.f32 %v246, 0.24554236
  %v295 = vmul.f32 %v247, 0.24554236
  %v296 = vmul.f32 %v248, 0.24554236
  %v297 = vmul.f32 %v249, 0.24554236
  %v298 = vmul.f32 %v250, 0.24554236
  %v299 = vmul.f32 %v251, 0.24554236
  %v300 = vmul.f32 %v252, 0.24554236
  %v301 = vmul.f32 %v253, 0.24554236
  %v302 = vmul.f32 %v254, 0.24554236
  %v303 = vmul.f32 %v255, 0.24554236
  %v304 = vmul.f32 %v256, 0.24554236
  %v305 = vmul.f32 %v257, 0.24554236
  %v306 = vmul.f32 %v258, 0.24554236
  %v307 = vmul.f32 %v259, 0.24554236
  %v308 = vmul.f32 %v260, 0.24554236
  %v309 = vmul.f32 %v261, 0.24554236
  %v310 = vmul.f32 %v262, 0.24554236
  %v311 = vmul.f32 %v263, 0.24554236
  %v312 = vmul.f32 %v264, 0.24554236
  %v313 = vmul.f32 %v265, 0.24554236
  %v314 = vmul.f32 %v266, 0.24554236
  %v315 = vmul.f32 %v267, 0.24554236
  %v316 = vmul.f32 %v268, 0.24554236
  %v317 = vmul.f32 %v269, 0.24554236
  %v318 = vmul.f32 %v270, 0.24554236
  %v319 = vmul.f32 %v271, 0.24554236
  %v320 = vmul.f32 %v272, 0.24554236
  %v321 = vmul.f32 %v273, 0.24554236
  %v322 = vmul.f32 %v274, 0.24554236
  %v323 = vmul.f32 %v275, 0.24554236
  %v324 = vmul.f32 %v276, 0.24554236
  %v325 = vmul.f32 %v277, 0.24554236
  %v326 = vmul.f32 %v278, 0.24554236
  %v327 = vmul.f32 %v279, 0.24554236
  %v328 = vmul.f32 %v280, 0.24554236
  %v329 = vmul.f32 %v281, 0.24554236
  %v330 = vmul.f32 %v282, 0.24554236
  %v331 = vmul.f32 %v283, 0.24554236
  %v332 = vmul.f32 %v284, 0.24554236
  %v333 = vadd.f32 %v188, %v285
  %v334 = vadd.f32 %v189, %v286
  %v335 = vadd.f32 %v190, %v287
  %v336 = vadd.f32 %v191, %v288
  %v337 = vadd.f32 %v192, %v289
  %v338 = vadd.f32 %v193, %v290
  %v339 = vadd.f32 %v194, %v291
  %v340 = vadd.f32 %v195, %v292
  %v341 = vadd.f32 %v196, %v293
  %v342 = vadd.f32 %v197, %v294
  %v343 = vadd.f32 %v198, %v295
  %v344 = vadd.f32 %v199, %v296
  %v345 = vadd.f32 %v200, %v297
  %v346 = vadd.f32 %v201, %v298
  %v347 = vadd.f32 %v202, %v299
  %v348 = vadd.f32 %v203, %v300
  %v349 = vadd.f32 %v204, %v301
  %v350 = vadd.f32 %v205, %v302
  %v351 = vadd.f32 %v206, %v303
  %v352 = vadd.f32 %v207, %v304
  %v353 = vadd.f32 %v208, %v305
  %v354 = vadd.f32 %v209, %v306
  %v355 = vadd.f32 %v210, %v307
  %v356 = vadd.f32 %v211, %v308
  %v357 = vadd.f32 %v212, %v309
  %v358 = vadd.f32 %v213, %v310
  %v359 = vadd.f32 %v214, %v311
  %v360 = vadd.f32 %v215, %v312
  %v361 = vadd.f32 %v216, %v313
  %v362 = vadd.f32 %v217, %v314
  %v363 = vadd.f32 %v218, %v315
  %v364 = vadd.f32 %v219, %v316
  %v365 = vadd.f32 %v220, %v317
  %v366 = vadd.f32 %v221, %v318
  %v367 = vadd.f32 %v222, %v319
  %v368 = vadd.f32 %v223, %v320
  %v369 = vadd.f32 %v224, %v321
  %v370 = vadd.f32 %v225, %v322
  %v371 = vadd.f32 %v226, %v323
  %v372 = vadd.f32 %v227, %v324
  %v373 = vadd.f32 %v228, %v325
  %v374 = vadd.f32 %v229, %v326
  %v375 = vadd.f32 %v230, %v327
  %v376 = vadd.f32 %v231, %v328
  %v377 = vadd.f32 %v232, %v329
  %v378 = vadd.f32 %v233, %v330
  %v379 = vadd.f32 %v234, %v331
  %v380 = vadd.f32 %v235, %v332
  %v381 = vld [vmem:[%s106] sm:$0xff]
  %v382 = vld [vmem:[%s106 + $0x8] sm:$0xff]
  %v383 = vld [vmem:[%s106 + $0x10] sm:$0xf]
  %v384 = vld [vmem:[%s106 + $0x18] sm:$0xff]
  %v385 = vld [vmem:[%s106 + $0x20] sm:$0xff]
  %v386 = vld [vmem:[%s106 + $0x28] sm:$0xf]
  %v387 = vld [vmem:[%s106 + $0x30] sm:$0xff]
  %v388 = vld [vmem:[%s106 + $0x38] sm:$0xff]
  %v389 = vld [vmem:[%s106 + $0x40] sm:$0xf]
  %v390 = vld [vmem:[%s106 + $0x48] sm:$0xff]
  %v391 = vld [vmem:[%s106 + $0x50] sm:$0xff]
  %v392 = vld [vmem:[%s106 + $0x58] sm:$0xf]
  %v393 = vld [vmem:[%s106 + $0x60] sm:$0xff]
  %v394 = vld [vmem:[%s106 + $0x68] sm:$0xff]
  %v395 = vld [vmem:[%s106 + $0x70] sm:$0xf]
  %v396 = vld [vmem:[%s106 + $0x78] sm:$0xff]
  %v397 = vld [vmem:[%s106 + $0x80] sm:$0xff]
  %v398 = vld [vmem:[%s106 + $0x88] sm:$0xf]
  %v399 = vld [vmem:[%s106 + $0x90] sm:$0xff]
  %v400 = vld [vmem:[%s106 + $0x98] sm:$0xff]
  %v401 = vld [vmem:[%s106 + $0xa0] sm:$0xf]
  %v402 = vld [vmem:[%s106 + $0xa8] sm:$0xff]
  %v403 = vld [vmem:[%s106 + $0xb0] sm:$0xff]
  %v404 = vld [vmem:[%s106 + $0xb8] sm:$0xf]
  %v405 = vld [vmem:[%s106 + $0xc0] sm:$0xff]
  %v406 = vld [vmem:[%s106 + $0xc8] sm:$0xff]
  %v407 = vld [vmem:[%s106 + $0xd0] sm:$0xf]
  %v408 = vld [vmem:[%s106 + $0xd8] sm:$0xff]
  %v409 = vld [vmem:[%s106 + $0xe0] sm:$0xff]
  %v410 = vld [vmem:[%s106 + $0xe8] sm:$0xf]
  %v411 = vld [vmem:[%s106 + $0xf0] sm:$0xff]
  %v412 = vld [vmem:[%s106 + $0xf8] sm:$0xff]
  %v413 = vld [vmem:[%s106 + $0x100] sm:$0xf]
  %v414 = vld [vmem:[%s106 + $0x108] sm:$0xff]
  %v415 = vld [vmem:[%s106 + $0x110] sm:$0xff]
  %v416 = vld [vmem:[%s106 + $0x118] sm:$0xf]
  %v417 = vld [vmem:[%s106 + $0x120] sm:$0xff]
  %v418 = vld [vmem:[%s106 + $0x128] sm:$0xff]
  %v419 = vld [vmem:[%s106 + $0x130] sm:$0xf]
  %v420 = vld [vmem:[%s106 + $0x138] sm:$0xff]
  %v421 = vld [vmem:[%s106 + $0x140] sm:$0xff]
  %v422 = vld [vmem:[%s106 + $0x148] sm:$0xf]
  %v423 = vld [vmem:[%s106 + $0x150] sm:$0xff]
  %v424 = vld [vmem:[%s106 + $0x158] sm:$0xff]
  %v425 = vld [vmem:[%s106 + $0x160] sm:$0xf]
  %v426 = vld [vmem:[%s106 + $0x168] sm:$0xff]
  %v427 = vld [vmem:[%s106 + $0x170] sm:$0xff]
  %v428 = vld [vmem:[%s106 + $0x178] sm:$0xf]
  %v429 = vmul.f32 %v381, 0.3880925
  %v430 = vmul.f32 %v382, 0.3880925
  %v431 = vmul.f32 %v383, 0.3880925
  %v432 = vmul.f32 %v384, 0.3880925
  %v433 = vmul.f32 %v385, 0.3880925
  %v434 = vmul.f32 %v386, 0.3880925
  %v435 = vmul.f32 %v387, 0.3880925
  %v436 = vmul.f32 %v388, 0.3880925
  %v437 = vmul.f32 %v389, 0.3880925
  %v438 = vmul.f32 %v390, 0.3880925
  %v439 = vmul.f32 %v391, 0.3880925
  %v440 = vmul.f32 %v392, 0.3880925
  %v441 = vmul.f32 %v393, 0.3880925
  %v442 = vmul.f32 %v394, 0.3880925
  %v443 = vmul.f32 %v395, 0.3880925
  %v444 = vmul.f32 %v396, 0.3880925
  %v445 = vmul.f32 %v397, 0.3880925
  %v446 = vmul.f32 %v398, 0.3880925
  %v447 = vmul.f32 %v399, 0.3880925
  %v448 = vmul.f32 %v400, 0.3880925
  %v449 = vmul.f32 %v401, 0.3880925
  %v450 = vmul.f32 %v402, 0.3880925
  %v451 = vmul.f32 %v403, 0.3880925
  %v452 = vmul.f32 %v404, 0.3880925
  %v453 = vmul.f32 %v405, 0.3880925
  %v454 = vmul.f32 %v406, 0.3880925
  %v455 = vmul.f32 %v407, 0.3880925
  %v456 = vmul.f32 %v408, 0.3880925
  %v457 = vmul.f32 %v409, 0.3880925
  %v458 = vmul.f32 %v410, 0.3880925
  %v459 = vmul.f32 %v411, 0.3880925
  %v460 = vmul.f32 %v412, 0.3880925
  %v461 = vmul.f32 %v413, 0.3880925
  %v462 = vmul.f32 %v414, 0.3880925
  %v463 = vmul.f32 %v415, 0.3880925
  %v464 = vmul.f32 %v416, 0.3880925
  %v465 = vmul.f32 %v417, 0.3880925
  %v466 = vmul.f32 %v418, 0.3880925
  %v467 = vmul.f32 %v419, 0.3880925
  %v468 = vmul.f32 %v420, 0.3880925
  %v469 = vmul.f32 %v421, 0.3880925
  %v470 = vmul.f32 %v422, 0.3880925
  %v471 = vmul.f32 %v423, 0.3880925
  %v472 = vmul.f32 %v424, 0.3880925
  %v473 = vmul.f32 %v425, 0.3880925
  %v474 = vmul.f32 %v426, 0.3880925
  %v475 = vmul.f32 %v427, 0.3880925
  %v476 = vmul.f32 %v428, 0.3880925
  %v477 = vadd.f32 %v333, %v429
  %v478 = vadd.f32 %v334, %v430
  %v479 = vadd.f32 %v335, %v431
  %v480 = vadd.f32 %v336, %v432
  %v481 = vadd.f32 %v337, %v433
  %v482 = vadd.f32 %v338, %v434
  %v483 = vadd.f32 %v339, %v435
  %v484 = vadd.f32 %v340, %v436
  %v485 = vadd.f32 %v341, %v437
  %v486 = vadd.f32 %v342, %v438
  %v487 = vadd.f32 %v343, %v439
  %v488 = vadd.f32 %v344, %v440
  %v489 = vadd.f32 %v345, %v441
  %v490 = vadd.f32 %v346, %v442
  %v491 = vadd.f32 %v347, %v443
  %v492 = vadd.f32 %v348, %v444
  %v493 = vadd.f32 %v349, %v445
  %v494 = vadd.f32 %v350, %v446
  %v495 = vadd.f32 %v351, %v447
  %v496 = vadd.f32 %v352, %v448
  %v497 = vadd.f32 %v353, %v449
  %v498 = vadd.f32 %v354, %v450
  %v499 = vadd.f32 %v355, %v451
  %v500 = vadd.f32 %v356, %v452
  %v501 = vadd.f32 %v357, %v453
  %v502 = vadd.f32 %v358, %v454
  %v503 = vadd.f32 %v359, %v455
  %v504 = vadd.f32 %v360, %v456
  %v505 = vadd.f32 %v361, %v457
  %v506 = vadd.f32 %v362, %v458
  %v507 = vadd.f32 %v363, %v459
  %v508 = vadd.f32 %v364, %v460
  %v509 = vadd.f32 %v365, %v461
  %v510 = vadd.f32 %v366, %v462
  %v511 = vadd.f32 %v367, %v463
  %v512 = vadd.f32 %v368, %v464
  %v513 = vadd.f32 %v369, %v465
  %v514 = vadd.f32 %v370, %v466
  %v515 = vadd.f32 %v371, %v467
  %v516 = vadd.f32 %v372, %v468
  %v517 = vadd.f32 %v373, %v469
  %v518 = vadd.f32 %v374, %v470
  %v519 = vadd.f32 %v375, %v471
  %v520 = vadd.f32 %v376, %v472
  %v521 = vadd.f32 %v377, %v473
  %v522 = vadd.f32 %v378, %v474
  %v523 = vadd.f32 %v379, %v475
  %v524 = vadd.f32 %v380, %v476
  %s525 = scalar_lea.vmem [#allocation2], 72
  %v526 = vld [vmem:[%s525] sm:$0xff]
  %v527 = vld [vmem:[%s525 + $0x8] sm:$0xff]
  %v528 = vld [vmem:[%s525 + $0x10] sm:$0xf]
  %v529 = vld [vmem:[%s525 + $0x18] sm:$0xff]
  %v530 = vld [vmem:[%s525 + $0x20] sm:$0xff]
  %v531 = vld [vmem:[%s525 + $0x28] sm:$0xf]
  %v532 = vld [vmem:[%s525 + $0x30] sm:$0xff]
  %v533 = vld [vmem:[%s525 + $0x38] sm:$0xff]
  %v534 = vld [vmem:[%s525 + $0x40] sm:$0xf]
  %v535 = vld [vmem:[%s525 + $0x48] sm:$0xff]
  %v536 = vld [vmem:[%s525 + $0x50] sm:$0xff]
  %v537 = vld [vmem:[%s525 + $0x58] sm:$0xf]
  %v538 = vld [vmem:[%s525 + $0x60] sm:$0xff]
  %v539 = vld [vmem:[%s525 + $0x68] sm:$0xff]
  %v540 = vld [vmem:[%s525 + $0x70] sm:$0xf]
  %v541 = vld [vmem:[%s525 + $0x78] sm:$0xff]
  %v542 = vld [vmem:[%s525 + $0x80] sm:$0xff]
  %v543 = vld [vmem:[%s525 + $0x88] sm:$0xf]
  %v544 = vld [vmem:[%s525 + $0x90] sm:$0xff]
  %v545 = vld [vmem:[%s525 + $0x98] sm:$0xff]
  %v546 = vld [vmem:[%s525 + $0xa0] sm:$0xf]
  %v547 = vld [vmem:[%s525 + $0xa8] sm:$0xff]
  %v548 = vld [vmem:[%s525 + $0xb0] sm:$0xff]
  %v549 = vld [vmem:[%s525 + $0xb8] sm:$0xf]
  %v550 = vld [vmem:[%s525 + $0xc0] sm:$0xff]
  %v551 = vld [vmem:[%s525 + $0xc8] sm:$0xff]
  %v552 = vld [vmem:[%s525 + $0xd0] sm:$0xf]
  %v553 = vld [vmem:[%s525 + $0xd8] sm:$0xff]
  %v554 = vld [vmem:[%s525 + $0xe0] sm:$0xff]
  %v555 = vld [vmem:[%s525 + $0xe8] sm:$0xf]
  %v556 = vld [vmem:[%s525 + $0xf0] sm:$0xff]
  %v557 = vld [vmem:[%s525 + $0xf8] sm:$0xff]
  %v558 = vld [vmem:[%s525 + $0x100] sm:$0xf]
  %v559 = vld [vmem:[%s525 + $0x108] sm:$0xff]
  %v560 = vld [vmem:[%s525 + $0x110] sm:$0xff]
  %v561 = vld [vmem:[%s525 + $0x118] sm:$0xf]
  %v562 = vld [vmem:[%s525 + $0x120] sm:$0xff]
  %v563 = vld [vmem:[%s525 + $0x128] sm:$0xff]
  %v564 = vld [vmem:[%s525 + $0x130] sm:$0xf]
  %v565 = vld [vmem:[%s525 + $0x138] sm:$0xff]
  %v566 = vld [vmem:[%s525 + $0x140] sm:$0xff]
  %v567 = vld [vmem:[%s525 + $0x148] sm:$0xf]
  %v568 = vld [vmem:[%s525 + $0x150] sm:$0xff]
  %v569 = vld [vmem:[%s525 + $0x158] sm:$0xff]
  %v570 = vld [vmem:[%s525 + $0x160] sm:$0xf]
  %v571 = vld [vmem:[%s525 + $0x168] sm:$0xff]
  %v572 = vld [vmem:[%s525 + $0x170] sm:$0xff]
  %v573 = vld [vmem:[%s525 + $0x178] sm:$0xf]
  %v574 = vmul.f32 %v526, 0.24554236
  %v575 = vmul.f32 %v527, 0.24554236
  %v576 = vmul.f32 %v528, 0.24554236
  %v577 = vmul.f32 %v529, 0.24554236
  %v578 = vmul.f32 %v530, 0.24554236
  %v579 = vmul.f32 %v531, 0.24554236
  %v580 = vmul.f32 %v532, 0.24554236
  %v581 = vmul.f32 %v533, 0.24554236
  %v582 = vmul.f32 %v534, 0.24554236
  %v583 = vmul.f32 %v535, 0.24554236
  %v584 = vmul.f32 %v536, 0.24554236
  %v585 = vmul.f32 %v537, 0.24554236
  %v586 = vmul.f32 %v538, 0.24554236
  %v587 = vmul.f32 %v539, 0.24554236
  %v588 = vmul.f32 %v540, 0.24554236
  %v589 = vmul.f32 %v541, 0.24554236
  %v590 = vmul.f32 %v542, 0.24554236
  %v591 = vmul.f32 %v543, 0.24554236
  %v592 = vmul.f32 %v544, 0.24554236
  %v593 = vmul.f32 %v545, 0.24554236
  %v594 = vmul.f32 %v546, 0.24554236
  %v595 = vmul.f32 %v547, 0.24554236
  %v596 = vmul.f32 %v548, 0.24554236
  %v597 = vmul.f32 %v549, 0.24554236
  %v598 = vmul.f32 %v550, 0.24554236
  %v599 = vmul.f32 %v551, 0.24554236
  %v600 = vmul.f32 %v552, 0.24554236
  %v601 = vmul.f32 %v553, 0.24554236
  %v602 = vmul.f32 %v554, 0.24554236
  %v603 = vmul.f32 %v555, 0.24554236
  %v604 = vmul.f32 %v556, 0.24554236
  %v605 = vmul.f32 %v557, 0.24554236
  %v606 = vmul.f32 %v558, 0.24554236
  %v607 = vmul.f32 %v559, 0.24554236
  %v608 = vmul.f32 %v560, 0.24554236
  %v609 = vmul.f32 %v561, 0.24554236
  %v610 = vmul.f32 %v562, 0.24554236
  %v611 = vmul.f32 %v563, 0.24554236
  %v612 = vmul.f32 %v564, 0.24554236
  %v613 = vmul.f32 %v565, 0.24554236
  %v614 = vmul.f32 %v566, 0.24554236
  %v615 = vmul.f32 %v567, 0.24554236
  %v616 = vmul.f32 %v568, 0.24554236
  %v617 = vmul.f32 %v569, 0.24554236
  %v618 = vmul.f32 %v570, 0.24554236
  %v619 = vmul.f32 %v571, 0.24554236
  %v620 = vmul.f32 %v572, 0.24554236
  %v621 = vmul.f32 %v573, 0.24554236
  %v622 = vadd.f32 %v477, %v574
  %v623 = vadd.f32 %v478, %v575
  %v624 = vadd.f32 %v479, %v576
  %v625 = vadd.f32 %v480, %v577
  %v626 = vadd.f32 %v481, %v578
  %v627 = vadd.f32 %v482, %v579
  %v628 = vadd.f32 %v483, %v580
  %v629 = vadd.f32 %v484, %v581
  %v630 = vadd.f32 %v485, %v582
  %v631 = vadd.f32 %v486, %v583
  %v632 = vadd.f32 %v487, %v584
  %v633 = vadd.f32 %v488, %v585
  %v634 = vadd.f32 %v489, %v586
  %v635 = vadd.f32 %v490, %v587
  %v636 = vadd.f32 %v491, %v588
  %v637 = vadd.f32 %v492, %v589
  %v638 = vadd.f32 %v493, %v590
  %v639 = vadd.f32 %v494, %v591
  %v640 = vadd.f32 %v495, %v592
  %v641 = vadd.f32 %v496, %v593
  %v642 = vadd.f32 %v497, %v594
  %v643 = vadd.f32 %v498, %v595
  %v644 = vadd.f32 %v499, %v596
  %v645 = vadd.f32 %v500, %v597
  %v646 = vadd.f32 %v501, %v598
  %v647 = vadd.f32 %v502, %v599
  %v648 = vadd.f32 %v503, %v600
  %v649 = vadd.f32 %v504, %v601
  %v650 = vadd.f32 %v505, %v602
  %v651 = vadd.f32 %v506, %v603
  %v652 = vadd.f32 %v507, %v604
  %v653 = vadd.f32 %v508, %v605
  %v654 = vadd.f32 %v509, %v606
  %v655 = vadd.f32 %v510, %v607
  %v656 = vadd.f32 %v511, %v608
  %v657 = vadd.f32 %v512, %v609
  %v658 = vadd.f32 %v513, %v610
  %v659 = vadd.f32 %v514, %v611
  %v660 = vadd.f32 %v515, %v612
  %v661 = vadd.f32 %v516, %v613
  %v662 = vadd.f32 %v517, %v614
  %v663 = vadd.f32 %v518, %v615
  %v664 = vadd.f32 %v519, %v616
  %v665 = vadd.f32 %v520, %v617
  %v666 = vadd.f32 %v521, %v618
  %v667 = vadd.f32 %v522, %v619
  %v668 = vadd.f32 %v523, %v620
  %v669 = vadd.f32 %v524, %v621
  %s670 = scalar_lea.vmem [#allocation2], 96
  %v671 = vld [vmem:[%s670] sm:$0xff]
  %v672 = vld [vmem:[%s670 + $0x8] sm:$0xff]
  %v673 = vld [vmem:[%s670 + $0x10] sm:$0xf]
  %v674 = vld [vmem:[%s670 + $0x18] sm:$0xff]
  %v675 = vld [vmem:[%s670 + $0x20] sm:$0xff]
  %v676 = vld [vmem:[%s670 + $0x28] sm:$0xf]
  %v677 = vld [vmem:[%s670 + $0x30] sm:$0xff]
  %v678 = vld [vmem:[%s670 + $0x38] sm:$0xff]
  %v679 = vld [vmem:[%s670 + $0x40] sm:$0xf]
  %v680 = vld [vmem:[%s670 + $0x48] sm:$0xff]
  %v681 = vld [vmem:[%s670 + $0x50] sm:$0xff]
  %v682 = vld [vmem:[%s670 + $0x58] sm:$0xf]
  %v683 = vld [vmem:[%s670 + $0x60] sm:$0xff]
  %v684 = vld [vmem:[%s670 + $0x68] sm:$0xff]
  %v685 = vld [vmem:[%s670 + $0x70] sm:$0xf]
  %v686 = vld [vmem:[%s670 + $0x78] sm:$0xff]
  %v687 = vld [vmem:[%s670 + $0x80] sm:$0xff]
  %v688 = vld [vmem:[%s670 + $0x88] sm:$0xf]
  %v689 = vld [vmem:[%s670 + $0x90] sm:$0xff]
  %v690 = vld [vmem:[%s670 + $0x98] sm:$0xff]
  %v691 = vld [vmem:[%s670 + $0xa0] sm:$0xf]
  %v692 = vld [vmem:[%s670 + $0xa8] sm:$0xff]
  %v693 = vld [vmem:[%s670 + $0xb0] sm:$0xff]
  %v694 = vld [vmem:[%s670 + $0xb8] sm:$0xf]
  %v695 = vld [vmem:[%s670 + $0xc0] sm:$0xff]
  %v696 = vld [vmem:[%s670 + $0xc8] sm:$0xff]
  %v697 = vld [vmem:[%s670 + $0xd0] sm:$0xf]
  %v698 = vld [vmem:[%s670 + $0xd8] sm:$0xff]
  %v699 = vld [vmem:[%s670 + $0xe0] sm:$0xff]
  %v700 = vld [vmem:[%s670 + $0xe8] sm:$0xf]
  %v701 = vld [vmem:[%s670 + $0xf0] sm:$0xff]
  %v702 = vld [vmem:[%s670 + $0xf8] sm:$0xff]
  %v703 = vld [vmem:[%s670 + $0x100] sm:$0xf]
  %v704 = vld [vmem:[%s670 + $0x108] sm:$0xff]
  %v705 = vld [vmem:[%s670 + $0x110] sm:$0xff]
  %v706 = vld [vmem:[%s670 + $0x118] sm:$0xf]
  %v707 = vld [vmem:[%s670 + $0x120] sm:$0xff]
  %v708 = vld [vmem:[%s670 + $0x128] sm:$0xff]
  %v709 = vld [vmem:[%s670 + $0x130] sm:$0xf]
  %v710 = vld [vmem:[%s670 + $0x138] sm:$0xff]
  %v711 = vld [vmem:[%s670 + $0x140] sm:$0xff]
  %v712 = vld [vmem:[%s670 + $0x148] sm:$0xf]
  %v713 = vld [vmem:[%s670 + $0x150] sm:$0xff]
  %v714 = vld [vmem:[%s670 + $0x158] sm:$0xff]
  %v715 = vld [vmem:[%s670 + $0x160] sm:$0xf]
  %v716 = vld [vmem:[%s670 + $0x168] sm:$0xff]
  %v717 = vld [vmem:[%s670 + $0x170] sm:$0xff]
  %v718 = vld [vmem:[%s670 + $0x178] sm:$0xf]
  %v719 = vmul.f32 %v671, 0.060411405
  %v720 = vmul.f32 %v672, 0.060411405
  %v721 = vmul.f32 %v673, 0.060411405
  %v722 = vmul.f32 %v674, 0.060411405
  %v723 = vmul.f32 %v675, 0.060411405
  %v724 = vmul.f32 %v676, 0.060411405
  %v725 = vmul.f32 %v677, 0.060411405
  %v726 = vmul.f32 %v678, 0.060411405
  %v727 = vmul.f32 %v679, 0.060411405
  %v728 = vmul.f32 %v680, 0.060411405
  %v729 = vmul.f32 %v681, 0.060411405
  %v730 = vmul.f32 %v682, 0.060411405
  %v731 = vmul.f32 %v683, 0.060411405
  %v732 = vmul.f32 %v684, 0.060411405
  %v733 = vmul.f32 %v685, 0.060411405
  %v734 = vmul.f32 %v686, 0.060411405
  %v735 = vmul.f32 %v687, 0.060411405
  %v736 = vmul.f32 %v688, 0.060411405
  %v737 = vmul.f32 %v689, 0.060411405
  %v738 = vmul.f32 %v690, 0.060411405
  %v739 = vmul.f32 %v691, 0.060411405
  %v740 = vmul.f32 %v692, 0.060411405
  %v741 = vmul.f32 %v693, 0.060411405
  %v742 = vmul.f32 %v694, 0.060411405
  %v743 = vmul.f32 %v695, 0.060411405
  %v744 = vmul.f32 %v696, 0.060411405
  %v745 = vmul.f32 %v697, 0.060411405
  %v746 = vmul.f32 %v698, 0.060411405
  %v747 = vmul.f32 %v699, 0.060411405
  %v748 = vmul.f32 %v700, 0.060411405
  %v749 = vmul.f32 %v701, 0.060411405
  %v750 = vmul.f32 %v702, 0.060411405
  %v751 = vmul.f32 %v703, 0.060411405
  %v752 = vmul.f32 %v704, 0.060411405
  %v753 = vmul.f32 %v705, 0.060411405
  %v754 = vmul.f32 %v706, 0.060411405
  %v755 = vmul.f32 %v707, 0.060411405
  %v756 = vmul.f32 %v708, 0.060411405
  %v757 = vmul.f32 %v709, 0.060411405
  %v758 = vmul.f32 %v710, 0.060411405
  %v759 = vmul.f32 %v711, 0.060411405
  %v760 = vmul.f32 %v712, 0.060411405
  %v761 = vmul.f32 %v713, 0.060411405
  %v762 = vmul.f32 %v714, 0.060411405
  %v763 = vmul.f32 %v715, 0.060411405
  %v764 = vmul.f32 %v716, 0.060411405
  %v765 = vmul.f32 %v717, 0.060411405
  %v766 = vmul.f32 %v718, 0.060411405
  %v767 = vadd.f32 %v622, %v719
  %v768 = vadd.f32 %v623, %v720
  %v769 = vadd.f32 %v624, %v721
  %v770 = vadd.f32 %v625, %v722
  %v771 = vadd.f32 %v626, %v723
  %v772 = vadd.f32 %v627, %v724
  %v773 = vadd.f32 %v628, %v725
  %v774 = vadd.f32 %v629, %v726
  %v775 = vadd.f32 %v630, %v727
  %v776 = vadd.f32 %v631, %v728
  %v777 = vadd.f32 %v632, %v729
  %v778 = vadd.f32 %v633, %v730
  %v779 = vadd.f32 %v634, %v731
  %v780 = vadd.f32 %v635, %v732
  %v781 = vadd.f32 %v636, %v733
  %v782 = vadd.f32 %v637, %v734
  %v783 = vadd.f32 %v638, %v735
  %v784 = vadd.f32 %v639, %v736
  %v785 = vadd.f32 %v640, %v737
  %v786 = vadd.f32 %v641, %v738
  %v787 = vadd.f32 %v642, %v739
  %v788 = vadd.f32 %v643, %v740
  %v789 = vadd.f32 %v644, %v741
  %v790 = vadd.f32 %v645, %v742
  %v791 = vadd.f32 %v646, %v743
  %v792 = vadd.f32 %v647, %v744
  %v793 = vadd.f32 %v648, %v745
  %v794 = vadd.f32 %v649, %v746
  %v795 = vadd.f32 %v650, %v747
  %v796 = vadd.f32 %v651, %v748
  %v797 = vadd.f32 %v652, %v749
  %v798 = vadd.f32 %v653, %v750
  %v799 = vadd.f32 %v654, %v751
  %v800 = vadd.f32 %v655, %v752
  %v801 = vadd.f32 %v656, %v753
  %v802 = vadd.f32 %v657, %v754
  %v803 = vadd.f32 %v658, %v755
  %v804 = vadd.f32 %v659, %v756
  %v805 = vadd.f32 %v660, %v757
  %v806 = vadd.f32 %v661, %v758
  %v807 = vadd.f32 %v662, %v759
  %v808 = vadd.f32 %v663, %v760
  %v809 = vadd.f32 %v664, %v761
  %v810 = vadd.f32 %v665, %v762
  %v811 = vadd.f32 %v666, %v763
  %v812 = vadd.f32 %v667, %v764
  %v813 = vadd.f32 %v668, %v765
  %v814 = vadd.f32 %v669, %v766
  %v815 = vmul.f32 %v767, 0.060411405
  %v816 = vmul.f32 %v768, 0.060411405
  %v817 = vmul.f32 %v770, 0.060411405
  %v818 = vmul.f32 %v771, 0.060411405
  %v819 = vmul.f32 %v773, 0.060411405
  %v820 = vmul.f32 %v774, 0.060411405
  %v821 = vmul.f32 %v776, 0.060411405
  %v822 = vmul.f32 %v777, 0.060411405
  %v823 = vmul.f32 %v779, 0.060411405
  %v824 = vmul.f32 %v780, 0.060411405
  %v825 = vmul.f32 %v782, 0.060411405
  %v826 = vmul.f32 %v783, 0.060411405
  %v827 = vmul.f32 %v785, 0.060411405
  %v828 = vmul.f32 %v786, 0.060411405
  %v829 = vmul.f32 %v788, 0.060411405
  %v830 = vmul.f32 %v789, 0.060411405
  %v831 = vmul.f32 %v791, 0.060411405
  %v832 = vmul.f32 %v792, 0.060411405
  %v833 = vmul.f32 %v794, 0.060411405
  %v834 = vmul.f32 %v795, 0.060411405
  %v835 = vmul.f32 %v797, 0.060411405
  %v836 = vmul.f32 %v798, 0.060411405
  %v837 = vmul.f32 %v800, 0.060411405
  %v838 = vmul.f32 %v801, 0.060411405
  %v839 = vmul.f32 %v803, 0.060411405
  %v840 = vmul.f32 %v804, 0.060411405
  %v841 = vmul.f32 %v806, 0.060411405
  %v842 = vmul.f32 %v807, 0.060411405
  %v843 = vmul.f32 %v809, 0.060411405
  %v844 = vmul.f32 %v810, 0.060411405
  %v845 = vmul.f32 %v812, 0.060411405
  %v846 = vmul.f32 %v813, 0.060411405
  %v847 = vmul.f32 %v767, 0.24554236
  %v848 = vmul.f32 %v768, 0.24554236
  %v849 = vmul.f32 %v769, 0.24554236
  %v850 = vmul.f32 %v770, 0.24554236
  %v851 = vmul.f32 %v771, 0.24554236
  %v852 = vmul.f32 %v772, 0.24554236
  %v853 = vmul.f32 %v773, 0.24554236
  %v854 = vmul.f32 %v774, 0.24554236
  %v855 = vmul.f32 %v775, 0.24554236
  %v856 = vmul.f32 %v776, 0.24554236
  %v857 = vmul.f32 %v777, 0.24554236
  %v858 = vmul.f32 %v778, 0.24554236
  %v859 = vmul.f32 %v779, 0.24554236
  %v860 = vmul.f32 %v780, 0.24554236
  %v861 = vmul.f32 %v781, 0.24554236
  %v862 = vmul.f32 %v782, 0.24554236
  %v863 = vmul.f32 %v783, 0.24554236
  %v864 = vmul.f32 %v784, 0.24554236
  %v865 = vmul.f32 %v785, 0.24554236
  %v866 = vmul.f32 %v786, 0.24554236
  %v867 = vmul.f32 %v787, 0.24554236
  %v868 = vmul.f32 %v788, 0.24554236
  %v869 = vmul.f32 %v789, 0.24554236
  %v870 = vmul.f32 %v790, 0.24554236
  %v871 = vmul.f32 %v791, 0.24554236
  %v872 = vmul.f32 %v792, 0.24554236
  %v873 = vmul.f32 %v793, 0.24554236
  %v874 = vmul.f32 %v794, 0.24554236
  %v875 = vmul.f32 %v795, 0.24554236
  %v876 = vmul.f32 %v796, 0.24554236
  %v877 = vmul.f32 %v797, 0.24554236
  %v878 = vmul.f32 %v798, 0.24554236
  %v879 = vmul.f32 %v799, 0.24554236
  %v880 = vmul.f32 %v800, 0.24554236
  %v881 = vmul.f32 %v801, 0.24554236
  %v882 = vmul.f32 %v802, 0.24554236
  %v883 = vmul.f32 %v803, 0.24554236
  %v884 = vmul.f32 %v804, 0.24554236
  %v885 = vmul.f32 %v805, 0.24554236
  %v886 = vmul.f32 %v806, 0.24554236
  %v887 = vmul.f32 %v807, 0.24554236
  %v888 = vmul.f32 %v808, 0.24554236
  %v889 = vmul.f32 %v809, 0.24554236
  %v890 = vmul.f32 %v810, 0.24554236
  %v891 = vmul.f32 %v811, 0.24554236
  %v892 = vmul.f32 %v812, 0.24554236
  %v893 = vmul.f32 %v813, 0.24554236
  %v894 = vmul.f32 %v814, 0.24554236
  %vm943 = vcmask 1046528
  %v944 = vrot.slane %v847, 1
  %v945 = vrot.slane %v848, 1
  %v946 = vsel %vm943, %v944, %v945
  %v947 = vrot.slane %v849, 1
  %v948 = vsel %vm943, %v945, %v947
  %v949 = vrot.slane %v850, 1
  %v950 = vrot.slane %v851, 1
  %v951 = vsel %vm943, %v949, %v950
  %v952 = vrot.slane %v852, 1
  %v953 = vsel %vm943, %v950, %v952
  %v954 = vrot.slane %v853, 1
  %v955 = vrot.slane %v854, 1
  %v956 = vsel %vm943, %v954, %v955
  %v957 = vrot.slane %v855, 1
  %v958 = vsel %vm943, %v955, %v957
  %v959 = vrot.slane %v856, 1
  %v960 = vrot.slane %v857, 1
  %v961 = vsel %vm943, %v959, %v960
  %v962 = vrot.slane %v858, 1
  %v963 = vsel %vm943, %v960, %v962
  %v964 = vrot.slane %v859, 1
  %v965 = vrot.slane %v860, 1
  %v966 = vsel %vm943, %v964, %v965
  %v967 = vrot.slane %v861, 1
  %v968 = vsel %vm943, %v965, %v967
  %v969 = vrot.slane %v862, 1
  %v970 = vrot.slane %v863, 1
  %v971 = vsel %vm943, %v969, %v970
  %v972 = vrot.slane %v864, 1
  %v973 = vsel %vm943, %v970, %v972
  %v974 = vrot.slane %v865, 1
  %v975 = vrot.slane %v866, 1
  %v976 = vsel %vm943, %v974, %v975
  %v977 = vrot.slane %v867, 1
  %v978 = vsel %vm943, %v975, %v977
  %v979 = vrot.slane %v868, 1
  %v980 = vrot.slane %v869, 1
  %v981 = vsel %vm943, %v979, %v980
  %v982 = vrot.slane %v870, 1
  %v983 = vsel %vm943, %v980, %v982
  %v984 = vrot.slane %v871, 1
  %v985 = vrot.slane %v872, 1
  %v986 = vsel %vm943, %v984, %v985
  %v987 = vrot.slane %v873, 1
  %v988 = vsel %vm943, %v985, %v987
  %v989 = vrot.slane %v874, 1
  %v990 = vrot.slane %v875, 1
  %v991 = vsel %vm943, %v989, %v990
  %v992 = vrot.slane %v876, 1
  %v993 = vsel %vm943, %v990, %v992
  %v994 = vrot.slane %v877, 1
  %v995 = vrot.slane %v878, 1
  %v996 = vsel %vm943, %v994, %v995
  %v997 = vrot.slane %v879, 1
  %v998 = vsel %vm943, %v995, %v997
  %v999 = vrot.slane %v880, 1
  %v1000 = vrot.slane %v881, 1
  %v1001 = vsel %vm943, %v999, %v1000
  %v1002 = vrot.slane %v882, 1
  %v1003 = vsel %vm943, %v1000, %v1002
  %v1004 = vrot.slane %v883, 1
  %v1005 = vrot.slane %v884, 1
  %v1006 = vsel %vm943, %v1004, %v1005
  %v1007 = vrot.slane %v885, 1
  %v1008 = vsel %vm943, %v1005, %v1007
  %v1009 = vrot.slane %v886, 1
  %v1010 = vrot.slane %v887, 1
  %v1011 = vsel %vm943, %v1009, %v1010
  %v1012 = vrot.slane %v888, 1
  %v1013 = vsel %vm943, %v1010, %v1012
  %v1014 = vrot.slane %v889, 1
  %v1015 = vrot.slane %v890, 1
  %v1016 = vsel %vm943, %v1014, %v1015
  %v1017 = vrot.slane %v891, 1
  %v1018 = vsel %vm943, %v1015, %v1017
  %v1019 = vrot.slane %v892, 1
  %v1020 = vrot.slane %v893, 1
  %v1021 = vsel %vm943, %v1019, %v1020
  %v1022 = vrot.slane %v894, 1
  %v1023 = vsel %vm943, %v1020, %v1022
  %v1056 = vadd.f32 %v815, %v946
  %v1057 = vadd.f32 %v816, %v948
  %v1058 = vadd.f32 %v817, %v951
  %v1059 = vadd.f32 %v818, %v953
  %v1060 = vadd.f32 %v819, %v956
  %v1061 = vadd.f32 %v820, %v958
  %v1062 = vadd.f32 %v821, %v961
  %v1063 = vadd.f32 %v822, %v963
  %v1064 = vadd.f32 %v823, %v966
  %v1065 = vadd.f32 %v824, %v968
  %v1066 = vadd.f32 %v825, %v971
  %v1067 = vadd.f32 %v826, %v973
  %v1068 = vadd.f32 %v827, %v976
  %v1069 = vadd.f32 %v828, %v978
  %v1070 = vadd.f32 %v829, %v981
  %v1071 = vadd.f32 %v830, %v983
  %v1072 = vadd.f32 %v831, %v986
  %v1073 = vadd.f32 %v832, %v988
  %v1074 = vadd.f32 %v833, %v991
  %v1075 = vadd.f32 %v834, %v993
  %v1076 = vadd.f32 %v835, %v996
  %v1077 = vadd.f32 %v836, %v998
  %v1078 = vadd.f32 %v837, %v1001
  %v1079 = vadd.f32 %v838, %v1003
  %v1080 = vadd.f32 %v839, %v1006
  %v1081 = vadd.f32 %v840, %v1008
  %v1082 = vadd.f32 %v841, %v1011
  %v1083 = vadd.f32 %v842, %v1013
  %v1084 = vadd.f32 %v843, %v1016
  %v1085 = vadd.f32 %v844, %v1018
  %v1086 = vadd.f32 %v845, %v1021
  %v1087 = vadd.f32 %v846, %v1023
  %v1088 = vmul.f32 %v767, 0.3880925
  %v1089 = vmul.f32 %v768, 0.3880925
  %v1090 = vmul.f32 %v769, 0.3880925
  %v1091 = vmul.f32 %v770, 0.3880925
  %v1092 = vmul.f32 %v771, 0.3880925
  %v1093 = vmul.f32 %v772, 0.3880925
  %v1094 = vmul.f32 %v773, 0.3880925
  %v1095 = vmul.f32 %v774, 0.3880925
  %v1096 = vmul.f32 %v775, 0.3880925
  %v1097 = vmul.f32 %v776, 0.3880925
  %v1098 = vmul.f32 %v777, 0.3880925
  %v1099 = vmul.f32 %v778, 0.3880925
  %v1100 = vmul.f32 %v779, 0.3880925
  %v1101 = vmul.f32 %v780, 0.3880925
  %v1102 = vmul.f32 %v781, 0.3880925
  %v1103 = vmul.f32 %v782, 0.3880925
  %v1104 = vmul.f32 %v783, 0.3880925
  %v1105 = vmul.f32 %v784, 0.3880925
  %v1106 = vmul.f32 %v785, 0.3880925
  %v1107 = vmul.f32 %v786, 0.3880925
  %v1108 = vmul.f32 %v787, 0.3880925
  %v1109 = vmul.f32 %v788, 0.3880925
  %v1110 = vmul.f32 %v789, 0.3880925
  %v1111 = vmul.f32 %v790, 0.3880925
  %v1112 = vmul.f32 %v791, 0.3880925
  %v1113 = vmul.f32 %v792, 0.3880925
  %v1114 = vmul.f32 %v793, 0.3880925
  %v1115 = vmul.f32 %v794, 0.3880925
  %v1116 = vmul.f32 %v795, 0.3880925
  %v1117 = vmul.f32 %v796, 0.3880925
  %v1118 = vmul.f32 %v797, 0.3880925
  %v1119 = vmul.f32 %v798, 0.3880925
  %v1120 = vmul.f32 %v799, 0.3880925
  %v1121 = vmul.f32 %v800, 0.3880925
  %v1122 = vmul.f32 %v801, 0.3880925
  %v1123 = vmul.f32 %v802, 0.3880925
  %v1124 = vmul.f32 %v803, 0.3880925
  %v1125 = vmul.f32 %v804, 0.3880925
  %v1126 = vmul.f32 %v805, 0.3880925
  %v1127 = vmul.f32 %v806, 0.3880925
  %v1128 = vmul.f32 %v807, 0.3880925
  %v1129 = vmul.f32 %v808, 0.3880925
  %v1130 = vmul.f32 %v809, 0.3880925
  %v1131 = vmul.f32 %v810, 0.3880925
  %v1132 = vmul.f32 %v811, 0.3880925
  %v1133 = vmul.f32 %v812, 0.3880925
  %v1134 = vmul.f32 %v813, 0.3880925
  %v1135 = vmul.f32 %v814, 0.3880925
  %vm1184 = vcmask 1045504
  %v1185 = vrot.slane %v1088, 2
  %v1186 = vrot.slane %v1089, 2
  %v1187 = vsel %vm1184, %v1185, %v1186
  %v1188 = vrot.slane %v1090, 2
  %v1189 = vsel %vm1184, %v1186, %v1188
  %v1190 = vrot.slane %v1091, 2
  %v1191 = vrot.slane %v1092, 2
  %v1192 = vsel %vm1184, %v1190, %v1191
  %v1193 = vrot.slane %v1093, 2
  %v1194 = vsel %vm1184, %v1191, %v1193
  %v1195 = vrot.slane %v1094, 2
  %v1196 = vrot.slane %v1095, 2
  %v1197 = vsel %vm1184, %v1195, %v1196
  %v1198 = vrot.slane %v1096, 2
  %v1199 = vsel %vm1184, %v1196, %v1198
  %v1200 = vrot.slane %v1097, 2
  %v1201 = vrot.slane %v1098, 2
  %v1202 = vsel %vm1184, %v1200, %v1201
  %v1203 = vrot.slane %v1099, 2
  %v1204 = vsel %vm1184, %v1201, %v1203
  %v1205 = vrot.slane %v1100, 2
  %v1206 = vrot.slane %v1101, 2
  %v1207 = vsel %vm1184, %v1205, %v1206
  %v1208 = vrot.slane %v1102, 2
  %v1209 = vsel %vm1184, %v1206, %v1208
  %v1210 = vrot.slane %v1103, 2
  %v1211 = vrot.slane %v1104, 2
  %v1212 = vsel %vm1184, %v1210, %v1211
  %v1213 = vrot.slane %v1105, 2
  %v1214 = vsel %vm1184, %v1211, %v1213
  %v1215 = vrot.slane %v1106, 2
  %v1216 = vrot.slane %v1107, 2
  %v1217 = vsel %vm1184, %v1215, %v1216
  %v1218 = vrot.slane %v1108, 2
  %v1219 = vsel %vm1184, %v1216, %v1218
  %v1220 = vrot.slane %v1109, 2
  %v1221 = vrot.slane %v1110, 2
  %v1222 = vsel %vm1184, %v1220, %v1221
  %v1223 = vrot.slane %v1111, 2
  %v1224 = vsel %vm1184, %v1221, %v1223
  %v1225 = vrot.slane %v1112, 2
  %v1226 = vrot.slane %v1113, 2
  %v1227 = vsel %vm1184, %v1225, %v1226
  %v1228 = vrot.slane %v1114, 2
  %v1229 = vsel %vm1184, %v1226, %v1228
  %v1230 = vrot.slane %v1115, 2
  %v1231 = vrot.slane %v1116, 2
  %v1232 = vsel %vm1184, %v1230, %v1231
  %v1233 = vrot.slane %v1117, 2
  %v1234 = vsel %vm1184, %v1231, %v1233
  %v1235 = vrot.slane %v1118, 2
  %v1236 = vrot.slane %v1119, 2
  %v1237 = vsel %vm1184, %v1235, %v1236
  %v1238 = vrot.slane %v1120, 2
  %v1239 = vsel %vm1184, %v1236, %v1238
  %v1240 = vrot.slane %v1121, 2
  %v1241 = vrot.slane %v1122, 2
  %v1242 = vsel %vm1184, %v1240, %v1241
  %v1243 = vrot.slane %v1123, 2
  %v1244 = vsel %vm1184, %v1241, %v1243
  %v1245 = vrot.slane %v1124, 2
  %v1246 = vrot.slane %v1125, 2
  %v1247 = vsel %vm1184, %v1245, %v1246
  %v1248 = vrot.slane %v1126, 2
  %v1249 = vsel %vm1184, %v1246, %v1248
  %v1250 = vrot.slane %v1127, 2
  %v1251 = vrot.slane %v1128, 2
  %v1252 = vsel %vm1184, %v1250, %v1251
  %v1253 = vrot.slane %v1129, 2
  %v1254 = vsel %vm1184, %v1251, %v1253
  %v1255 = vrot.slane %v1130, 2
  %v1256 = vrot.slane %v1131, 2
  %v1257 = vsel %vm1184, %v1255, %v1256
  %v1258 = vrot.slane %v1132, 2
  %v1259 = vsel %vm1184, %v1256, %v1258
  %v1260 = vrot.slane %v1133, 2
  %v1261 = vrot.slane %v1134, 2
  %v1262 = vsel %vm1184, %v1260, %v1261
  %v1263 = vrot.slane %v1135, 2
  %v1264 = vsel %vm1184, %v1261, %v1263
  %v1297 = vadd.f32 %v1056, %v1187
  %v1298 = vadd.f32 %v1057, %v1189
  %v1299 = vadd.f32 %v1058, %v1192
  %v1300 = vadd.f32 %v1059, %v1194
  %v1301 = vadd.f32 %v1060, %v1197
  %v1302 = vadd.f32 %v1061, %v1199
  %v1303 = vadd.f32 %v1062, %v1202
  %v1304 = vadd.f32 %v1063, %v1204
  %v1305 = vadd.f32 %v1064, %v1207
  %v1306 = vadd.f32 %v1065, %v1209
  %v1307 = vadd.f32 %v1066, %v1212
  %v1308 = vadd.f32 %v1067, %v1214
  %v1309 = vadd.f32 %v1068, %v1217
  %v1310 = vadd.f32 %v1069, %v1219
  %v1311 = vadd.f32 %v1070, %v1222
  %v1312 = vadd.f32 %v1071, %v1224
  %v1313 = vadd.f32 %v1072, %v1227
  %v1314 = vadd.f32 %v1073, %v1229
  %v1315 = vadd.f32 %v1074, %v1232
  %v1316 = vadd.f32 %v1075, %v1234
  %v1317 = vadd.f32 %v1076, %v1237
  %v1318 = vadd.f32 %v1077, %v1239
  %v1319 = vadd.f32 %v1078, %v1242
  %v1320 = vadd.f32 %v1079, %v1244
  %v1321 = vadd.f32 %v1080, %v1247
  %v1322 = vadd.f32 %v1081, %v1249
  %v1323 = vadd.f32 %v1082, %v1252
  %v1324 = vadd.f32 %v1083, %v1254
  %v1325 = vadd.f32 %v1084, %v1257
  %v1326 = vadd.f32 %v1085, %v1259
  %v1327 = vadd.f32 %v1086, %v1262
  %v1328 = vadd.f32 %v1087, %v1264
  %vm1329 = vcmask 1044480
  %v1330 = vrot.slane %v847, 3
  %v1331 = vrot.slane %v848, 3
  %v1332 = vsel %vm1329, %v1330, %v1331
  %v1333 = vrot.slane %v849, 3
  %v1334 = vsel %vm1329, %v1331, %v1333
  %v1335 = vrot.slane %v850, 3
  %v1336 = vrot.slane %v851, 3
  %v1337 = vsel %vm1329, %v1335, %v1336
  %v1338 = vrot.slane %v852, 3
  %v1339 = vsel %vm1329, %v1336, %v1338
  %v1340 = vrot.slane %v853, 3
  %v1341 = vrot.slane %v854, 3
  %v1342 = vsel %vm1329, %v1340, %v1341
  %v1343 = vrot.slane %v855, 3
  %v1344 = vsel %vm1329, %v1341, %v1343
  %v1345 = vrot.slane %v856, 3
  %v1346 = vrot.slane %v857, 3
  %v1347 = vsel %vm1329, %v1345, %v1346
  %v1348 = vrot.slane %v858, 3
  %v1349 = vsel %vm1329, %v1346, %v1348
  %v1350 = vrot.slane %v859, 3
  %v1351 = vrot.slane %v860, 3
  %v1352 = vsel %vm1329, %v1350, %v1351
  %v1353 = vrot.slane %v861, 3
  %v1354 = vsel %vm1329, %v1351, %v1353
  %v1355 = vrot.slane %v862, 3
  %v1356 = vrot.slane %v863, 3
  %v1357 = vsel %vm1329, %v1355, %v1356
  %v1358 = vrot.slane %v864, 3
  %v1359 = vsel %vm1329, %v1356, %v1358
  %v1360 = vrot.slane %v865, 3
  %v1361 = vrot.slane %v866, 3
  %v1362 = vsel %vm1329, %v1360, %v1361
  %v1363 = vrot.slane %v867, 3
  %v1364 = vsel %vm1329, %v1361, %v1363
  %v1365 = vrot.slane %v868, 3
  %v1366 = vrot.slane %v869, 3
  %v1367 = vsel %vm1329, %v1365, %v1366
  %v1368 = vrot.slane %v870, 3
  %v1369 = vsel %vm1329, %v1366, %v1368
  %v1370 = vrot.slane %v871, 3
  %v1371 = vrot.slane %v872, 3
  %v1372 = vsel %vm1329, %v1370, %v1371
  %v1373 = vrot.slane %v873, 3
  %v1374 = vsel %vm1329, %v1371, %v1373
  %v1375 = vrot.slane %v874, 3
  %v1376 = vrot.slane %v875, 3
  %v1377 = vsel %vm1329, %v1375, %v1376
  %v1378 = vrot.slane %v876, 3
  %v1379 = vsel %vm1329, %v1376, %v1378
  %v1380 = vrot.slane %v877, 3
  %v1381 = vrot.slane %v878, 3
  %v1382 = vsel %vm1329, %v1380, %v1381
  %v1383 = vrot.slane %v879, 3
  %v1384 = vsel %vm1329, %v1381, %v1383
  %v1385 = vrot.slane %v880, 3
  %v1386 = vrot.slane %v881, 3
  %v1387 = vsel %vm1329, %v1385, %v1386
  %v1388 = vrot.slane %v882, 3
  %v1389 = vsel %vm1329, %v1386, %v1388
  %v1390 = vrot.slane %v883, 3
  %v1391 = vrot.slane %v884, 3
  %v1392 = vsel %vm1329, %v1390, %v1391
  %v1393 = vrot.slane %v885, 3
  %v1394 = vsel %vm1329, %v1391, %v1393
  %v1395 = vrot.slane %v886, 3
  %v1396 = vrot.slane %v887, 3
  %v1397 = vsel %vm1329, %v1395, %v1396
  %v1398 = vrot.slane %v888, 3
  %v1399 = vsel %vm1329, %v1396, %v1398
  %v1400 = vrot.slane %v889, 3
  %v1401 = vrot.slane %v890, 3
  %v1402 = vsel %vm1329, %v1400, %v1401
  %v1403 = vrot.slane %v891, 3
  %v1404 = vsel %vm1329, %v1401, %v1403
  %v1405 = vrot.slane %v892, 3
  %v1406 = vrot.slane %v893, 3
  %v1407 = vsel %vm1329, %v1405, %v1406
  %v1408 = vrot.slane %v894, 3
  %v1409 = vsel %vm1329, %v1406, %v1408
  %v1442 = vadd.f32 %v1297, %v1332
  %v1443 = vadd.f32 %v1298, %v1334
  %v1444 = vadd.f32 %v1299, %v1337
  %v1445 = vadd.f32 %v1300, %v1339
  %v1446 = vadd.f32 %v1301, %v1342
  %v1447 = vadd.f32 %v1302, %v1344
  %v1448 = vadd.f32 %v1303, %v1347
  %v1449 = vadd.f32 %v1304, %v1349
  %v1450 = vadd.f32 %v1305, %v1352
  %v1451 = vadd.f32 %v1306, %v1354
  %v1452 = vadd.f32 %v1307, %v1357
  %v1453 = vadd.f32 %v1308, %v1359
  %v1454 = vadd.f32 %v1309, %v1362
  %v1455 = vadd.f32 %v1310, %v1364
  %v1456 = vadd.f32 %v1311, %v1367
  %v1457 = vadd.f32 %v1312, %v1369
  %v1458 = vadd.f32 %v1313, %v1372
  %v1459 = vadd.f32 %v1314, %v1374
  %v1460 = vadd.f32 %v1315, %v1377
  %v1461 = vadd.f32 %v1316, %v1379
  %v1462 = vadd.f32 %v1317, %v1382
  %v1463 = vadd.f32 %v1318, %v1384
  %v1464 = vadd.f32 %v1319, %v1387
  %v1465 = vadd.f32 %v1320, %v1389
  %v1466 = vadd.f32 %v1321, %v1392
  %v1467 = vadd.f32 %v1322, %v1394
  %v1468 = vadd.f32 %v1323, %v1397
  %v1469 = vadd.f32 %v1324, %v1399
  %v1470 = vadd.f32 %v1325, %v1402
  %v1471 = vadd.f32 %v1326, %v1404
  %v1472 = vadd.f32 %v1327, %v1407
  %v1473 = vadd.f32 %v1328, %v1409
  %v1474 = vmul.f32 %v769, 0.060411405
  %v1475 = vmul.f32 %v772, 0.060411405
  %v1476 = vmul.f32 %v775, 0.060411405
  %v1477 = vmul.f32 %v778, 0.060411405
  %v1478 = vmul.f32 %v781, 0.060411405
  %v1479 = vmul.f32 %v784, 0.060411405
  %v1480 = vmul.f32 %v787, 0.060411405
  %v1481 = vmul.f32 %v790, 0.060411405
  %v1482 = vmul.f32 %v793, 0.060411405
  %v1483 = vmul.f32 %v796, 0.060411405
  %v1484 = vmul.f32 %v799, 0.060411405
  %v1485 = vmul.f32 %v802, 0.060411405
  %v1486 = vmul.f32 %v805, 0.060411405
  %v1487 = vmul.f32 %v808, 0.060411405
  %v1488 = vmul.f32 %v811, 0.060411405
  %v1489 = vmul.f32 %v814, 0.060411405
  %vm1538 = vcmask 1043456
  %v1539 = vrot.slane %v815, 4
  %v1540 = vrot.slane %v816, 4
  %v1541 = vsel %vm1538, %v1539, %v1540
  %v1542 = vrot.slane %v1474, 4
  %v1543 = vsel %vm1538, %v1540, %v1542
  %v1544 = vrot.slane %v817, 4
  %v1545 = vrot.slane %v818, 4
  %v1546 = vsel %vm1538, %v1544, %v1545
  %v1547 = vrot.slane %v1475, 4
  %v1548 = vsel %vm1538, %v1545, %v1547
  %v1549 = vrot.slane %v819, 4
  %v1550 = vrot.slane %v820, 4
  %v1551 = vsel %vm1538, %v1549, %v1550
  %v1552 = vrot.slane %v1476, 4
  %v1553 = vsel %vm1538, %v1550, %v1552
  %v1554 = vrot.slane %v821, 4
  %v1555 = vrot.slane %v822, 4
  %v1556 = vsel %vm1538, %v1554, %v1555
  %v1557 = vrot.slane %v1477, 4
  %v1558 = vsel %vm1538, %v1555, %v1557
  %v1559 = vrot.slane %v823, 4
  %v1560 = vrot.slane %v824, 4
  %v1561 = vsel %vm1538, %v1559, %v1560
  %v1562 = vrot.slane %v1478, 4
  %v1563 = vsel %vm1538, %v1560, %v1562
  %v1564 = vrot.slane %v825, 4
  %v1565 = vrot.slane %v826, 4
  %v1566 = vsel %vm1538, %v1564, %v1565
  %v1567 = vrot.slane %v1479, 4
  %v1568 = vsel %vm1538, %v1565, %v1567
  %v1569 = vrot.slane %v827, 4
  %v1570 = vrot.slane %v828, 4
  %v1571 = vsel %vm1538, %v1569, %v1570
  %v1572 = vrot.slane %v1480, 4
  %v1573 = vsel %vm1538, %v1570, %v1572
  %v1574 = vrot.slane %v829, 4
  %v1575 = vrot.slane %v830, 4
  %v1576 = vsel %vm1538, %v1574, %v1575
  %v1577 = vrot.slane %v1481, 4
  %v1578 = vsel %vm1538, %v1575, %v1577
  %v1579 = vrot.slane %v831, 4
  %v1580 = vrot.slane %v832, 4
  %v1581 = vsel %vm1538, %v1579, %v1580
  %v1582 = vrot.slane %v1482, 4
  %v1583 = vsel %vm1538, %v1580, %v1582
  %v1584 = vrot.slane %v833, 4
  %v1585 = vrot.slane %v834, 4
  %v1586 = vsel %vm1538, %v1584, %v1585
  %v1587 = vrot.slane %v1483, 4
  %v1588 = vsel %vm1538, %v1585, %v1587
  %v1589 = vrot.slane %v835, 4
  %v1590 = vrot.slane %v836, 4
  %v1591 = vsel %vm1538, %v1589, %v1590
  %v1592 = vrot.slane %v1484, 4
  %v1593 = vsel %vm1538, %v1590, %v1592
  %v1594 = vrot.slane %v837, 4
  %v1595 = vrot.slane %v838, 4
  %v1596 = vsel %vm1538, %v1594, %v1595
  %v1597 = vrot.slane %v1485, 4
  %v1598 = vsel %vm1538, %v1595, %v1597
  %v1599 = vrot.slane %v839, 4
  %v1600 = vrot.slane %v840, 4
  %v1601 = vsel %vm1538, %v1599, %v1600
  %v1602 = vrot.slane %v1486, 4
  %v1603 = vsel %vm1538, %v1600, %v1602
  %v1604 = vrot.slane %v841, 4
  %v1605 = vrot.slane %v842, 4
  %v1606 = vsel %vm1538, %v1604, %v1605
  %v1607 = vrot.slane %v1487, 4
  %v1608 = vsel %vm1538, %v1605, %v1607
  %v1609 = vrot.slane %v843, 4
  %v1610 = vrot.slane %v844, 4
  %v1611 = vsel %vm1538, %v1609, %v1610
  %v1612 = vrot.slane %v1488, 4
  %v1613 = vsel %vm1538, %v1610, %v1612
  %v1614 = vrot.slane %v845, 4
  %v1615 = vrot.slane %v846, 4
  %v1616 = vsel %vm1538, %v1614, %v1615
  %v1617 = vrot.slane %v1489, 4
  %v1618 = vsel %vm1538, %v1615, %v1617
  %v1651 = vadd.f32 %v1442, %v1541
  %v1652 = vadd.f32 %v1443, %v1543
  %v1653 = vadd.f32 %v1444, %v1546
  %v1654 = vadd.f32 %v1445, %v1548
  %v1655 = vadd.f32 %v1446, %v1551
  %v1656 = vadd.f32 %v1447, %v1553
  %v1657 = vadd.f32 %v1448, %v1556
  %v1658 = vadd.f32 %v1449, %v1558
  %v1659 = vadd.f32 %v1450, %v1561
  %v1660 = vadd.f32 %v1451, %v1563
  %v1661 = vadd.f32 %v1452, %v1566
  %v1662 = vadd.f32 %v1453, %v1568
  %v1663 = vadd.f32 %v1454, %v1571
  %v1664 = vadd.f32 %v1455, %v1573
  %v1665 = vadd.f32 %v1456, %v1576
  %v1666 = vadd.f32 %v1457, %v1578
  %v1667 = vadd.f32 %v1458, %v1581
  %v1668 = vadd.f32 %v1459, %v1583
  %v1669 = vadd.f32 %v1460, %v1586
  %v1670 = vadd.f32 %v1461, %v1588
  %v1671 = vadd.f32 %v1462, %v1591
  %v1672 = vadd.f32 %v1463, %v1593
  %v1673 = vadd.f32 %v1464, %v1596
  %v1674 = vadd.f32 %v1465, %v1598
  %v1675 = vadd.f32 %v1466, %v1601
  %v1676 = vadd.f32 %v1467, %v1603
  %v1677 = vadd.f32 %v1468, %v1606
  %v1678 = vadd.f32 %v1469, %v1608
  %v1679 = vadd.f32 %v1470, %v1611
  %v1680 = vadd.f32 %v1471, %v1613
  %v1681 = vadd.f32 %v1472, %v1616
  %v1682 = vadd.f32 %v1473, %v1618
  %1683 = vst.msk [vmem:[%s1] sm:$0xff] %vm107, %v1651
  %1684 = vst.msk [vmem:[%s1 + $0x8] sm:$0xff] %vm107, %v1652
  %1685 = vst.msk [vmem:[%s1 + $0x10] sm:$0xff] %vm107, %v1653
  %1686 = vst.msk [vmem:[%s1 + $0x18] sm:$0xff] %vm107, %v1654
  %1687 = vst.msk [vmem:[%s1 + $0x20] sm:$0xff] %vm107, %v1655
  %1688 = vst.msk [vmem:[%s1 + $0x28] sm:$0xff] %vm107, %v1656
  %1689 = vst.msk [vmem:[%s1 + $0x30] sm:$0xff] %vm107, %v1657
  %1690 = vst.msk [vmem:[%s1 + $0x38] sm:$0xff] %vm107, %v1658
  %1691 = vst.msk [vmem:[%s1 + $0x40] sm:$0xff] %vm107, %v1659
  %1692 = vst.msk [vmem:[%s1 + $0x48] sm:$0xff] %vm107, %v1660
  %1693 = vst.msk [vmem:[%s1 + $0x50] sm:$0xff] %vm107, %v1661
  %1694 = vst.msk [vmem:[%s1 + $0x58] sm:$0xff] %vm107, %v1662
  %1695 = vst.msk [vmem:[%s1 + $0x60] sm:$0xff] %vm107, %v1663
  %1696 = vst.msk [vmem:[%s1 + $0x68] sm:$0xff] %vm107, %v1664
  %1697 = vst.msk [vmem:[%s1 + $0x70] sm:$0xff] %vm107, %v1665
  %1698 = vst.msk [vmem:[%s1 + $0x78] sm:$0xff] %vm107, %v1666
  %1699 = vst.msk [vmem:[%s1 + $0x80] sm:$0xff] %vm107, %v1667
  %1700 = vst.msk [vmem:[%s1 + $0x88] sm:$0xff] %vm107, %v1668
  %1701 = vst.msk [vmem:[%s1 + $0x90] sm:$0xff] %vm107, %v1669
  %1702 = vst.msk [vmem:[%s1 + $0x98] sm:$0xff] %vm107, %v1670
  %1703 = vst.msk [vmem:[%s1 + $0xa0] sm:$0xff] %vm107, %v1671
  %1704 = vst.msk [vmem:[%s1 + $0xa8] sm:$0xff] %vm107, %v1672
  %1705 = vst.msk [vmem:[%s1 + $0xb0] sm:$0xff] %vm107, %v1673
  %1706 = vst.msk [vmem:[%s1 + $0xb8] sm:$0xff] %vm107, %v1674
  %1707 = vst.msk [vmem:[%s1 + $0xc0] sm:$0xff] %vm107, %v1675
  %1708 = vst.msk [vmem:[%s1 + $0xc8] sm:$0xff] %vm107, %v1676
  %1709 = vst.msk [vmem:[%s1 + $0xd0] sm:$0xff] %vm107, %v1677
  %1710 = vst.msk [vmem:[%s1 + $0xd8] sm:$0xff] %vm107, %v1678
  %1711 = vst.msk [vmem:[%s1 + $0xe0] sm:$0xff] %vm107, %v1679
  %1712 = vst.msk [vmem:[%s1 + $0xe8] sm:$0xff] %vm107, %v1680
  %1713 = vst.msk [vmem:[%s1 + $0xf0] sm:$0xff] %vm107, %v1681
  %1714 = vst.msk [vmem:[%s1 + $0xf8] sm:$0xff] %vm107, %v1682
  // Predicated region
  $region10: #{tpu_custom_call.1} parent=0 // pred_check
    _
  $region11: #{tpu_custom_call.1} parent=0 // pred_check_branch
    %1716 = sbr.rel (0) target = $region13
  $region12: #{tpu_custom_call.1} parent=0 // pred_region
    _
  $region13: #{tpu_custom_call.1} parent=0 // pred_fallthru
    _
  // Predicated region
  $region14: #{tpu_custom_call.1} parent=0 // pred_check
    _
  $region15: #{tpu_custom_call.1} parent=0 // pred_check_branch
    %1718 = sbr.rel (0) target = $region17
  $region16: #{tpu_custom_call.1} parent=0 // pred_region
    _
  $region17: #{tpu_custom_call.1} parent=0 // pred_fallthru
    _

</llo_original>
